<compile_context>
chip_gen: v5e
topology: v5e:2x2
jax: 0.10.0
libtpu: 0.0.40
codegen_flags: <defaults>
</compile_context>

<pallas_src>
import math
import functools

import jax
import jax.numpy as jnp
from jax.experimental import pallas as pl
from jax.experimental.pallas import tpu as pltpu


def _round_up(x: int, m: int) -> int:
    return ((x + m - 1) // m) * m


def _plan_tiles(in_features: int, out_features: int, tn_cap: int, tk_cap: int):
    """Pick lane-aligned tiles; pad dims to a multiple of the chosen tile."""
    k128 = _round_up(in_features, 128)
    n128 = _round_up(out_features, 128)
    # Guarantee >= 2 N tiles when possible so both v7x TensorCores stream W^T.
    if n128 >= 256:
        tn = min(tn_cap, _round_up((n128 + 1) // 2, 128))
    else:
        tn = n128
    n_pad = _round_up(n128, tn)
    tk = min(tk_cap, k128)
    k_pad = _round_up(k128, tk)
    return tk, tn, k_pad, n_pad


def _apply_activation(acc, activation: str):
    """acc is f32. sigmoid/tanh/exp go to the (otherwise idle) EUP slot."""
    if activation == "sigmoid":
        return pl.reciprocal(1.0 + jnp.exp(-acc), approx=True)
    elif activation == "relu":
        return jnp.maximum(acc, 0.0)
    elif activation == "tanh":
        return jnp.tanh(acc)
    else:  # identity
        return acc


# ----------------------------- kernels -------------------------------------


def _fused_kernel(x_ref, wt_ref, o_ref, *, activation: str):
    # x_ref: (B_pad, K_pad)   wt_ref: (K_pad, TN)   o_ref: (B_pad, TN)
    acc = jnp.dot(x_ref[...], wt_ref[...], preferred_element_type=jnp.float32)
    o_ref[...] = _apply_activation(acc, activation).astype(o_ref.dtype)


def _reduce_kernel_inplace(x_ref, wt_ref, o_ref, *, activation: str):
    # f32 output: accumulate directly into o_ref (no scratch).
    k = pl.program_id(1)

    @pl.when(k == 0)
    def _():
        o_ref[...] = jnp.zeros_like(o_ref)

    o_ref[...] += jnp.dot(
        x_ref[...], wt_ref[...], preferred_element_type=jnp.float32
    )

    @pl.when(k == pl.num_programs(1) - 1)
    def _():
        o_ref[...] = _apply_activation(o_ref[...], activation)


def _reduce_kernel_scratch(x_ref, wt_ref, o_ref, acc_ref, *, activation: str):
    # Non-f32 output: f32 VMEM accumulator, cast on the last K step.
    k = pl.program_id(1)

    @pl.when(k == 0)
    def _():
        acc_ref[...] = jnp.zeros_like(acc_ref)

    acc_ref[...] += jnp.dot(
        x_ref[...], wt_ref[...], preferred_element_type=jnp.float32
    )

    @pl.when(k == pl.num_programs(1) - 1)
    def _():
        o_ref[...] = _apply_activation(acc_ref[...], activation).astype(o_ref.dtype)


# ----------------------------- wrapper --------------------------------------


def _forward_impl(
    input_data,
    w_t_padded,
    *,
    out_features: int,
    tk: int,
    tn: int,
    activation: str,
    compute_dtype,
):
    B, in_f = input_data.shape
    k_pad, n_pad = w_t_padded.shape

    in_itemsize = jnp.dtype(compute_dtype).itemsize
    out_dtype = input_data.dtype
    out_itemsize = jnp.dtype(out_dtype).itemsize

    # Pad batch for full sublane packing (bf16 vreg holds [16, 128]).
    b_mult = 16 if in_itemsize == 2 else 8
    b_pad = max(_round_up(B, b_mult), b_mult)

    x = input_data.astype(compute_dtype)
    if (b_pad != B) or (k_pad != in_f):
        x = jnp.pad(x, ((0, b_pad - B), (0, k_pad - in_f)))

    n_tiles = n_pad // tn
    k_tiles = k_pad // tk

    # Explicit VMEM budget (double-buffered x, W^T, out + optional scratch).
    need = (
        2 * b_pad * tk * in_itemsize
        + 2 * tk * tn * in_itemsize
        + 2 * b_pad * tn * out_itemsize
    )
    use_scratch = (k_tiles > 1) and (jnp.dtype(out_dtype) != jnp.dtype(jnp.float32))
    if use_scratch:
        need += b_pad * tn * 4
    vmem_limit = int(min(48 << 20, max(32 << 20, int(need * 1.5))))

    if k_tiles == 1:
        # Fused path: no reduction grid, no accumulator, no phase gating.
        kernel = functools.partial(_fused_kernel, activation=activation)
        out = pl.pallas_call(
            kernel,
            out_shape=jax.ShapeDtypeStruct((b_pad, n_pad), out_dtype),
            grid_spec=pltpu.PrefetchScalarGridSpec(
                num_scalar_prefetch=0,
                grid=(n_tiles,),
                in_specs=[
                    pl.BlockSpec((b_pad, k_pad), lambda n: (0, 0)),  # x resident
                    pl.BlockSpec((k_pad, tn), lambda n: (0, n)),     # W^T tile
                ],
                out_specs=pl.BlockSpec((b_pad, tn), lambda n: (0, n)),
            ),
            compiler_params=pltpu.CompilerParams(
                dimension_semantics=("parallel",),
                vmem_limit_bytes=vmem_limit,
            ),
        )(x, w_t_padded)
    else:
        # K-reduction path (large in_features).
        if use_scratch:
            kernel = functools.partial(_reduce_kernel_scratch, activation=activation)
            scratch = [pltpu.VMEM((b_pad, tn), jnp.float32)]
        else:
            kernel = functools.partial(_reduce_kernel_inplace, activation=activation)
            scratch = []
        out = pl.pallas_call(
            kernel,
            out_shape=jax.ShapeDtypeStruct((b_pad, n_pad), out_dtype),
            grid_spec=pltpu.PrefetchScalarGridSpec(
                num_scalar_prefetch=0,
                grid=(n_tiles, k_tiles),  # K (reduction) last
                in_specs=[
                    pl.BlockSpec((b_pad, tk), lambda n, k: (0, k)),
                    pl.BlockSpec((tk, tn), lambda n, k: (k, n)),
                ],
                out_specs=pl.BlockSpec((b_pad, tn), lambda n, k: (0, n)),
                scratch_shapes=scratch,
            ),
            compiler_params=pltpu.CompilerParams(
                dimension_semantics=("parallel", "arbitrary"),
                vmem_limit_bytes=vmem_limit,
            ),
        )(x, w_t_padded)

    return out[:B, :out_features]


def make_encoder_forward(
    W: jax.Array,
    *,
    activation: str = "sigmoid",
    compute_dtype=jnp.bfloat16,
    tn_cap: int = 2048,
    tk_cap: int = 2048,
):
    """Prepare the (transposed, cast, padded) weight ONCE and return a jitted
    forward(input_data, user_id=None) closure.  user_id is accepted for
    signature parity with the PyTorch module but is unused (as in forward())."""
    out_f, in_f = W.shape
    tk, tn, k_pad, n_pad = _plan_tiles(in_f, out_f, tn_cap, tk_cap)

    # One-time weight preprocessing (outside the per-call path).
    w_t_padded = jnp.pad(
        W.T.astype(compute_dtype), ((0, k_pad - in_f), (0, n_pad - out_f))
    )

    fwd = jax.jit(
        lambda x, wt: _forward_impl(
            x,
            wt,
            out_features=out_f,
            tk=tk,
            tn=tn,
            activation=activation,
            compute_dtype=compute_dtype,
        )
    )

    def forward(input_data, user_id=None):
        del user_id  # not used by Encoder.forward (b_h and U are also unused)
        return fwd(input_data, w_t_padded)

    return forward


def init_encoder_params(key, in_features: int, out_features: int, user_num: int):
    """Matches the shapes/scales in Encoder.__init__ (b_h, U unused by forward)."""
    k_w, k_u = jax.random.split(key)
    scale = 4.0 * math.sqrt(6.0 / (in_features + out_features))
    W = jax.random.uniform(k_w, (out_features, in_features), jnp.float32) * scale
    b_h = jnp.zeros((out_features,), jnp.float32)                               # unused in forward
    U = jax.random.uniform(k_u, (user_num, out_features), jnp.float32) * scale  # unused in forward
    return W, b_h, U


if __name__ == "__main__":
    key = jax.random.PRNGKey(0)
    k_in, k_params, k_uid = jax.random.split(key, 3)

    batch = 8
    in_features = 1024
    out_features = 768
    user_num = 16

    input_data = jax.random.normal(k_in, (batch, in_features), jnp.float32)
    user_id = jax.random.randint(k_uid, (batch,), 0, user_num)  # unused by forward

    W, b_h, U = init_encoder_params(k_params, in_features, out_features, user_num)

    # References.
    x_bf = input_data.astype(jnp.bfloat16).astype(jnp.float32)
    w_bf = W.astype(jnp.bfloat16).astype(jnp.float32)
    ref_bf16 = jax.nn.sigmoid(x_bf @ w_bf.T)                 # same operand precision
    ref_f32 = jax.nn.sigmoid(input_data @ W.T)               # pure f32 math

    # 1) Default config: fused single-K-tile path, 2 N tiles (megacore-friendly).
    forward = make_encoder_forward(W, activation="sigmoid")
    out = forward(input_data, user_id)
    jax.block_until_ready(out)
    assert out.shape == (batch, out_features)
    assert jnp.allclose(out, ref_bf16, atol=5e-3, rtol=5e-3)
    assert jnp.allclose(out, ref_f32, atol=5e-2, rtol=5e-2)

    # 2) Force the K-reduction path (in-place f32 accumulation, no scratch)
    #    with small tile caps to exercise both kernels.
    forward_small = make_encoder_forward(
        W, activation="sigmoid", tn_cap=256, tk_cap=256
    )
    out2 = forward_small(input_data, user_id)
    jax.block_until_ready(out2)
    assert out2.shape == (batch, out_features)
    assert jnp.allclose(out2, ref_bf16, atol=5e-3, rtol=5e-3)
    assert jnp.allclose(out2, ref_f32, atol=5e-2, rtol=5e-2)

    print("KERNEL_OK")
</pallas_src>

<mosaic_0001>
module attributes {stable_mosaic.version = 11 : i64} {
  func.func @_fused_kernel(%arg0: i32, %arg1: memref<16x1024xbf16, #tpu.memory_space<vmem>>, %arg2: memref<1024x384xbf16, #tpu.memory_space<vmem>>, %arg3: memref<16x384xf32, #tpu.memory_space<vmem>>) attributes {dimension_semantics = [#tpu.dimension_semantics<parallel>], iteration_bounds = array<i64: 2>, scalar_prefetch = 0 : i64, scratch_operands = 0 : i64, tpu.core_type = #tpu.core_type<tc>, window_params = [{pipeline_mode = #tpu.pipeline_mode<synchronous>, transform_indices = @transform_0, window_bounds = array<i64: 16, 1024>}, {transform_indices = @transform_1, window_bounds = array<i64: 1024, 384>}, {transform_indices = @transform_2, window_bounds = array<i64: 16, 384>}]} {
    %c0 = arith.constant 0 : index
    %c0_0 = arith.constant 0 : index
    %0 = vector.load %arg1[%c0, %c0_0] : memref<16x1024xbf16, #tpu.memory_space<vmem>>, vector<16x1024xbf16>
    %c0_1 = arith.constant 0 : index
    %c0_2 = arith.constant 0 : index
    %1 = vector.load %arg2[%c0_1, %c0_2] : memref<1024x384xbf16, #tpu.memory_space<vmem>>, vector<1024x384xbf16>
    %cst = arith.constant dense<0.000000e+00> : vector<16x384xf32>
    %2 = tpu.matmul %0, %1, %cst {dimension_numbers = #tpu.dot_dimension_numbers<[1], [0], [0], [1], [0, 0, 1, 1], [], []>} : vector<16x1024xbf16>, vector<1024x384xbf16>, vector<16x384xf32> -> vector<16x384xf32>
    %cst_3 = arith.constant 0.000000e+00 : f32
    %3 = vector.broadcast %cst_3 : f32 to vector<16x384xf32>
    %4 = arith.subf %3, %2 : vector<16x384xf32>
    %5 = math.exp %4 : vector<16x384xf32>
    %cst_4 = arith.constant 1.000000e+00 : f32
    %6 = vector.broadcast %cst_4 : f32 to vector<16x384xf32>
    %7 = arith.addf %6, %5 : vector<16x384xf32>
    %8 = tpu.reciprocal %7 {approx = true} : vector<16x384xf32> -> vector<16x384xf32>
    %c0_5 = arith.constant 0 : index
    %c0_6 = arith.constant 0 : index
    %9 = vector.load %arg3[%c0_5, %c0_6] : memref<16x384xf32, #tpu.memory_space<vmem>>, vector<16x384xf32>
    tpu.vector_store %arg3[%c0_5, %c0_6], %8 {strides = array<i32>} : memref<16x384xf32, #tpu.memory_space<vmem>>, vector<16x384xf32>,
    return
  }
  func.func @transform_0(%arg0: i32) -> (i32, i32) {
    %c0_i32 = arith.constant 0 : i32
    %c0_i32_0 = arith.constant 0 : i32
    %c0_i32_1 = arith.constant 0 : i32
    return %c0_i32, %c0_i32_0 : i32, i32
  }
  func.func @transform_1(%arg0: i32) -> (i32, i32) {
    %c0_i32 = arith.constant 0 : i32
    %c0_i32_0 = arith.constant 0 : i32
    return %c0_i32, %arg0 : i32, i32
  }
  func.func @transform_2(%arg0: i32) -> (i32, i32) {
    %c0_i32 = arith.constant 0 : i32
    %c0_i32_0 = arith.constant 0 : i32
    return %c0_i32, %arg0 : i32, i32
  }
}

</mosaic_0001>

<llo_original>
// kernel: _lambda_.1
$region0: #{_lambda_.1}
  #allocation0 [shape = 'u32[]', space=smem, size = 0x4, offset = 0x4, fixed_abs, tag = 'smem constant byte address 0x4 - core index']
  #allocation1 [shape = 'u32[72,128]{1,0:T(1,128)}', space=vmem, size = 0x9000, scoped, tag = 'internal scratch']
  %s0 = inlined_call_operand.vmem [shape: bf16[16,1024], index: 0, kind: input, shape index: {}]
  %s1 = inlined_call_operand.hbm [shape: bf16[1024,768], index: 1, kind: input, shape index: {}]
  %s2 = inlined_call_operand.vmem [shape: f32[16,768], index: 2, kind: output, shape index: {}]
  %s3 = sld [smem:[#allocation0]]
  $region64: #{_lambda_.1} parent=0
    _
  %s5 = ssub.s32 1, %s3
  %s6 = scalar_select 0, %s5, %s3
  $region1: #{_lambda_.1} parent=0
    #allocation2 [shape = 'u8[1572864]{0}', space=vmem, size = 0x180000, scoped, tag = 'input window, operand 1']
    #allocation3 [shape = 's32[2]{0}', space=sflag, size = 0x8, scoped, tag = 'scoped memory for _lambda_.1']
    #allocation4 [shape = 'u8[49152]{0}', space=vmem, size = 0xc000, scoped, tag = 'output window, operand 0']
    %7 = vsyncpa [#allocation3], 0
    %s8 = scalar_lea.sflag [#allocation3], 1
    %9 = vsyncpa %s8, 0
    loop: start=0, step=1, limit=4
    $region2: #{_lambda_.1} parent=1 // loop_pre_header
      _
    $region3: #{_lambda_.1} parent=1 // loop_header
      %s11 = sphi 0, %s15
      %p12 = scmp.ge.s32.totalorder %s11, 4
      %s19 = sphi 0, %s19
      %s21 = sphi 0, %s19
      %s22 = sphi 0, %s21
      %s36 = sphi 0, %s22
      %s42 = sphi 0, %s44
      %s45 = sphi 0, %s42
      %s46 = sphi 0, %s45
      %s62 = sphi 0, %s46
      %s68 = sphi 0, %s70
      %s71 = sphi 0, %s68
      %s72 = sphi 0, %s71
      %s88 = sphi 0, %s72
    $region4: #{_lambda_.1} parent=1 // loop_header_branch
      %14 = sbr.rel (%p12) target = $region8
    $region5: #{_lambda_.1} parent=1 // loop_body
      %s16 = ssub.s32 %s11, 1
      %s17 = ssub.s32 %s11, 2
      %s18 = sadd.s32 %s11, 1
      %s20 = sadd.s32 %s19, 1
      %p23 = scmp.eq.s32.totalorder %s11, 1
      %p24 = scmp.ne.s32.totalorder %s19, %s21
      %p25 = scmp.eq.s32.totalorder %s11, 0
      %p26 = por %p24, %p25
      %p27 = scmp.ne.s32.totalorder %s19, %s21
      %p28 = scmp.eq.s32.totalorder %s16, 1
      %p29 = por %p27, %p28
      %p30 = scmp.ne.s32.totalorder %s21, %s22
      %p31 = scmp.eq.s32.totalorder %s16, 0
      %p32 = por %p30, %p31
      %p33 = scmp.ne.s32.totalorder %s21, %s22
      %p34 = scmp.eq.s32.totalorder %s17, 1
      %p35 = por %p33, %p34
      %p37 = scmp.ne.s32.totalorder %s22, %s36
      %p38 = scmp.eq.s32.totalorder %s17, 0
      %p39 = por %p37, %p38
      %s40 = ssub.s32 %s11, %s18
      %p41 = scmp.eq.s32.totalorder %s40, 0
      %s43 = sadd.s32 %s42, 1
      %s44 = scalar_select %p41, %s42, %s43
      %p47 = pneg %p41
      %p48 = scmp.eq.s32.totalorder %s11, 1
      %p49 = por %p47, %p48
      %p50 = scmp.ne.s32.totalorder %s42, %s45
      %p51 = scmp.eq.s32.totalorder %s11, 0
      %p52 = por %p50, %p51
      %p53 = scmp.ne.s32.totalorder %s42, %s45
      %p54 = scmp.eq.s32.totalorder %s16, 1
      %p55 = por %p53, %p54
      %p56 = scmp.ne.s32.totalorder %s45, %s46
      %p57 = scmp.eq.s32.totalorder %s16, 0
      %p58 = por %p56, %p57
      %p59 = scmp.ne.s32.totalorder %s45, %s46
      %p60 = scmp.eq.s32.totalorder %s17, 1
      %p61 = por %p59, %p60
      %p63 = scmp.ne.s32.totalorder %s46, %s62
      %p64 = scmp.eq.s32.totalorder %s17, 0
      %p65 = por %p63, %p64
      %s66 = ssub.s32 %s11, %s18
      %p67 = scmp.eq.s32.totalorder %s66, 0
      %s69 = sadd.s32 %s68, 1
      %s70 = scalar_select %p67, %s68, %s69
      %p73 = pneg %p67
      %p74 = scmp.eq.s32.totalorder %s11, 1
      %p75 = por %p73, %p74
      %p76 = scmp.ne.s32.totalorder %s68, %s71
      %p77 = scmp.eq.s32.totalorder %s11, 0
      %p78 = por %p76, %p77
      %p79 = scmp.ne.s32.totalorder %s68, %s71
      %p80 = scmp.eq.s32.totalorder %s16, 1
      %p81 = por %p79, %p80
      %p82 = scmp.ne.s32.totalorder %s71, %s72
      %p83 = scmp.eq.s32.totalorder %s16, 0
      %p84 = por %p82, %p83
      %p85 = scmp.ne.s32.totalorder %s71, %s72
      %p86 = scmp.eq.s32.totalorder %s17, 1
      %p87 = por %p85, %p86
      %p89 = scmp.ne.s32.totalorder %s72, %s88
      %p90 = scmp.eq.s32.totalorder %s17, 0
      %p91 = por %p89, %p90
      %p92 = scmp.le.s32.totalorder 1, %s11
      %p93 = scmp.lt.s32.totalorder %s11, 3
      %p94 = pnand %p92, %p93
      %p95 = pneg %p94
      // Predicated region
      $region9: #{_lambda_.1} parent=5 // pred_check
        _
      $region10: #{_lambda_.1} parent=5 // pred_check_branch
        %97 = sbr.rel (%p94) target = $region12
      $region11: #{_lambda_.1} parent=5 // pred_region
        %s98 = ssub.s32 %s11, 1
        // Predicated region
        $region13: #{_lambda_.1} parent=11 // pred_check
          %p99 = pneg %p32
        $region14: #{_lambda_.1} parent=11 // pred_check_branch
          %101 = sbr.rel (%p99) target = $region16
        $region15: #{_lambda_.1} parent=11 // pred_region
          _
        $region16: #{_lambda_.1} parent=11 // pred_fallthru
          _
      $region12: #{_lambda_.1} parent=5 // pred_fallthru
        _
      %p102 = scmp.lt.s32.totalorder %s11, 2
      // Predicated region
      $region17: #{_lambda_.1} parent=5 // pred_check
        %p103 = pneg %p102
      $region18: #{_lambda_.1} parent=5 // pred_check_branch
        %105 = sbr.rel (%p103) target = $region20
      $region19: #{_lambda_.1} parent=5 // pred_region
        // Predicated region
        $region21: #{_lambda_.1} parent=19 // pred_check
          %p106 = pneg %p52
        $region22: #{_lambda_.1} parent=19 // pred_check_branch
          %108 = sbr.rel (%p106) target = $region24
        $region23: #{_lambda_.1} parent=19 // pred_region
          %s109 = sand.u32 %s42, 1
          %s110 = scalar_lea.sflag [#allocation3], %s109
          %s111 = sand.u32 %s42, 1
          %s112 = smul.addr %s111, 1536
          %s113 = scalar_lea.vmem [#allocation2], %s112
          %s114 = smul.u32 3, %s11
          %116 = vsyncadd %s110, 0
          %s117 = smul.addr %s114, 4
          %s118 = scalar_lea.hbm %s1, %s117
          %s119 = sshll.u32 %s118, 4
          %s120 = int_to_ptr.hbm [resolvable:$true] %s119
          %s121 = sshll.u32 %s113, 4
          %s122 = int_to_ptr.vmem [resolvable:$true] %s121
          %127 = dma.hbm_to_vmem [thread:$0]  %s120, 24576, %s122, %s110, 384, 192, 12
        $region24: #{_lambda_.1} parent=19 // pred_fallthru
          _
      $region20: #{_lambda_.1} parent=5 // pred_fallthru
        _
      %p128 = scmp.le.s32.totalorder 1, %s11
      %p129 = scmp.lt.s32.totalorder %s11, 3
      %p130 = pnand %p128, %p129
      %p131 = pneg %p130
      // Predicated region
      $region25: #{_lambda_.1} parent=5 // pred_check
        _
      $region26: #{_lambda_.1} parent=5 // pred_check_branch
        %133 = sbr.rel (%p130) target = $region28
      $region27: #{_lambda_.1} parent=5 // pred_region
        %s134 = ssub.s32 %s11, 1
        %s135 = sand.u32 %s45, 1
        %s136 = scalar_lea.sflag [#allocation3], %s135
        %s137 = sand.u32 %s45, 1
        %s138 = smul.addr %s137, 1536
        %s139 = scalar_lea.vmem [#allocation2], %s138
        // Predicated region
        $region29: #{_lambda_.1} parent=27 // pred_check
          %p140 = pneg %p58
        $region30: #{_lambda_.1} parent=27 // pred_check_branch
          %142 = sbr.rel (%p140) target = $region32
        $region31: #{_lambda_.1} parent=27 // pred_region
          %144 = dma.done %s136, 24576
        $region32: #{_lambda_.1} parent=27 // pred_fallthru
          _
        %p145 = pneg %p32
        %p146 = pneg %p29
        %s147 = sand.u32 %s45, 1
        %s148 = scalar_lea.sflag [#allocation3], %s147
        %s149 = sand.u32 %s45, 1
        %s150 = smul.addr %s149, 1536
        %s151 = scalar_lea.vmem [#allocation2], %s150
        %p152 = pneg %p58
        %p153 = pneg %p55
        %p154 = pneg %p84
        %p155 = pneg %p81
        %s156 = sand.u32 %s71, 1
        %s157 = sand.u32 %s71, 1
        %s158 = smul.addr %s157, 48
        %s159 = scalar_lea.vmem [#allocation4], %s158
        %s160 = smul.u32 3, %s16
        %s161 = smul.u32 3, %s16
        %v162 = vld [vmem:[%s0] sm:$0xff]
        %v163 = vld [vmem:[%s0 + $0x8] sm:$0xff]
        %v164 = vld [vmem:[%s0 + $0x10] sm:$0xff]
        %v165 = vld [vmem:[%s0 + $0x18] sm:$0xff]
        %v166 = vld [vmem:[%s0 + $0x20] sm:$0xff]
        %v167 = vld [vmem:[%s0 + $0x28] sm:$0xff]
        %v168 = vld [vmem:[%s0 + $0x30] sm:$0xff]
        %v169 = vld [vmem:[%s0 + $0x38] sm:$0xff]
        %v170 = vld [vmem:[%s139] sm:$0xff]
        %v171 = vld [vmem:[%s139 + $0x8] sm:$0xf]
        %v172 = vld [vmem:[%s139 + $0xc] sm:$0xff]
        %v173 = vld [vmem:[%s139 + $0x14] sm:$0xf]
        %v174 = vld [vmem:[%s139 + $0x18] sm:$0xff]
        %v175 = vld [vmem:[%s139 + $0x20] sm:$0xf]
        %v176 = vld [vmem:[%s139 + $0x24] sm:$0xff]
        %v177 = vld [vmem:[%s139 + $0x2c] sm:$0xf]
        %v178 = vld [vmem:[%s139 + $0x30] sm:$0xff]
        %v179 = vld [vmem:[%s139 + $0x38] sm:$0xf]
        %v180 = vld [vmem:[%s139 + $0x3c] sm:$0xff]
        %v181 = vld [vmem:[%s139 + $0x44] sm:$0xf]
        %v182 = vld [vmem:[%s139 + $0x48] sm:$0xff]
        %v183 = vld [vmem:[%s139 + $0x50] sm:$0xf]
        %v184 = vld [vmem:[%s139 + $0x54] sm:$0xff]
        %v185 = vld [vmem:[%s139 + $0x5c] sm:$0xf]
        %v186 = vld [vmem:[%s139 + $0x60] sm:$0xff]
        %v187 = vld [vmem:[%s139 + $0x68] sm:$0xf]
        %v188 = vld [vmem:[%s139 + $0x6c] sm:$0xff]
        %v189 = vld [vmem:[%s139 + $0x74] sm:$0xf]
        %v190 = vld [vmem:[%s139 + $0x78] sm:$0xff]
        %v191 = vld [vmem:[%s139 + $0x80] sm:$0xf]
        %v192 = vld [vmem:[%s139 + $0x84] sm:$0xff]
        %v193 = vld [vmem:[%s139 + $0x8c] sm:$0xf]
        %v194 = vld [vmem:[%s139 + $0x90] sm:$0xff]
        %v195 = vld [vmem:[%s139 + $0x98] sm:$0xf]
        %v196 = vld [vmem:[%s139 + $0x9c] sm:$0xff]
        %v197 = vld [vmem:[%s139 + $0xa4] sm:$0xf]
        %v198 = vld [vmem:[%s139 + $0xa8] sm:$0xff]
        %v199 = vld [vmem:[%s139 + $0xb0] sm:$0xf]
        %v200 = vld [vmem:[%s139 + $0xb4] sm:$0xff]
        %v201 = vld [vmem:[%s139 + $0xbc] sm:$0xf]
        %v202 = vld [vmem:[%s139 + $0xc0] sm:$0xff]
        %v203 = vld [vmem:[%s139 + $0xc8] sm:$0xf]
        %v204 = vld [vmem:[%s139 + $0xcc] sm:$0xff]
        %v205 = vld [vmem:[%s139 + $0xd4] sm:$0xf]
        %v206 = vld [vmem:[%s139 + $0xd8] sm:$0xff]
        %v207 = vld [vmem:[%s139 + $0xe0] sm:$0xf]
        %v208 = vld [vmem:[%s139 + $0xe4] sm:$0xff]
        %v209 = vld [vmem:[%s139 + $0xec] sm:$0xf]
        %v210 = vld [vmem:[%s139 + $0xf0] sm:$0xff]
        %v211 = vld [vmem:[%s139 + $0xf8] sm:$0xf]
        %v212 = vld [vmem:[%s139 + $0xfc] sm:$0xff]
        %v213 = vld [vmem:[%s139 + $0x104] sm:$0xf]
        %v214 = vld [vmem:[%s139 + $0x108] sm:$0xff]
        %v215 = vld [vmem:[%s139 + $0x110] sm:$0xf]
        %v216 = vld [vmem:[%s139 + $0x114] sm:$0xff]
        %v217 = vld [vmem:[%s139 + $0x11c] sm:$0xf]
        %v218 = vld [vmem:[%s139 + $0x120] sm:$0xff]
        %v219 = vld [vmem:[%s139 + $0x128] sm:$0xf]
        %v220 = vld [vmem:[%s139 + $0x12c] sm:$0xff]
        %v221 = vld [vmem:[%s139 + $0x134] sm:$0xf]
        %v222 = vld [vmem:[%s139 + $0x138] sm:$0xff]
        %v223 = vld [vmem:[%s139 + $0x140] sm:$0xf]
        %v224 = vld [vmem:[%s139 + $0x144] sm:$0xff]
        %v225 = vld [vmem:[%s139 + $0x14c] sm:$0xf]
        %v226 = vld [vmem:[%s139 + $0x150] sm:$0xff]
        %v227 = vld [vmem:[%s139 + $0x158] sm:$0xf]
        %v228 = vld [vmem:[%s139 + $0x15c] sm:$0xff]
        %v229 = vld [vmem:[%s139 + $0x164] sm:$0xf]
        %v230 = vld [vmem:[%s139 + $0x168] sm:$0xff]
        %v231 = vld [vmem:[%s139 + $0x170] sm:$0xf]
        %v232 = vld [vmem:[%s139 + $0x174] sm:$0xff]
        %v233 = vld [vmem:[%s139 + $0x17c] sm:$0xf]
        %v234 = vld [vmem:[%s139 + $0x180] sm:$0xff]
        %v235 = vld [vmem:[%s139 + $0x188] sm:$0xf]
        %v236 = vld [vmem:[%s139 + $0x18c] sm:$0xff]
        %v237 = vld [vmem:[%s139 + $0x194] sm:$0xf]
        %v238 = vld [vmem:[%s139 + $0x198] sm:$0xff]
        %v239 = vld [vmem:[%s139 + $0x1a0] sm:$0xf]
        %v240 = vld [vmem:[%s139 + $0x1a4] sm:$0xff]
        %v241 = vld [vmem:[%s139 + $0x1ac] sm:$0xf]
        %v242 = vld [vmem:[%s139 + $0x1b0] sm:$0xff]
        %v243 = vld [vmem:[%s139 + $0x1b8] sm:$0xf]
        %v244 = vld [vmem:[%s139 + $0x1bc] sm:$0xff]
        %v245 = vld [vmem:[%s139 + $0x1c4] sm:$0xf]
        %v246 = vld [vmem:[%s139 + $0x1c8] sm:$0xff]
        %v247 = vld [vmem:[%s139 + $0x1d0] sm:$0xf]
        %v248 = vld [vmem:[%s139 + $0x1d4] sm:$0xff]
        %v249 = vld [vmem:[%s139 + $0x1dc] sm:$0xf]
        %v250 = vld [vmem:[%s139 + $0x1e0] sm:$0xff]
        %v251 = vld [vmem:[%s139 + $0x1e8] sm:$0xf]
        %v252 = vld [vmem:[%s139 + $0x1ec] sm:$0xff]
        %v253 = vld [vmem:[%s139 + $0x1f4] sm:$0xf]
        %v254 = vld [vmem:[%s139 + $0x1f8] sm:$0xff]
        %v255 = vld [vmem:[%s139 + $0x200] sm:$0xf]
        %v256 = vld [vmem:[%s139 + $0x204] sm:$0xff]
        %v257 = vld [vmem:[%s139 + $0x20c] sm:$0xf]
        %v258 = vld [vmem:[%s139 + $0x210] sm:$0xff]
        %v259 = vld [vmem:[%s139 + $0x218] sm:$0xf]
        %v260 = vld [vmem:[%s139 + $0x21c] sm:$0xff]
        %v261 = vld [vmem:[%s139 + $0x224] sm:$0xf]
        %v262 = vld [vmem:[%s139 + $0x228] sm:$0xff]
        %v263 = vld [vmem:[%s139 + $0x230] sm:$0xf]
        %v264 = vld [vmem:[%s139 + $0x234] sm:$0xff]
        %v265 = vld [vmem:[%s139 + $0x23c] sm:$0xf]
        %v266 = vld [vmem:[%s139 + $0x240] sm:$0xff]
        %v267 = vld [vmem:[%s139 + $0x248] sm:$0xf]
        %v268 = vld [vmem:[%s139 + $0x24c] sm:$0xff]
        %v269 = vld [vmem:[%s139 + $0x254] sm:$0xf]
        %v270 = vld [vmem:[%s139 + $0x258] sm:$0xff]
        %v271 = vld [vmem:[%s139 + $0x260] sm:$0xf]
        %v272 = vld [vmem:[%s139 + $0x264] sm:$0xff]
        %v273 = vld [vmem:[%s139 + $0x26c] sm:$0xf]
        %v274 = vld [vmem:[%s139 + $0x270] sm:$0xff]
        %v275 = vld [vmem:[%s139 + $0x278] sm:$0xf]
        %v276 = vld [vmem:[%s139 + $0x27c] sm:$0xff]
        %v277 = vld [vmem:[%s139 + $0x284] sm:$0xf]
        %v278 = vld [vmem:[%s139 + $0x288] sm:$0xff]
        %v279 = vld [vmem:[%s139 + $0x290] sm:$0xf]
        %v280 = vld [vmem:[%s139 + $0x294] sm:$0xff]
        %v281 = vld [vmem:[%s139 + $0x29c] sm:$0xf]
        %v282 = vld [vmem:[%s139 + $0x2a0] sm:$0xff]
        %v283 = vld [vmem:[%s139 + $0x2a8] sm:$0xf]
        %v284 = vld [vmem:[%s139 + $0x2ac] sm:$0xff]
        %v285 = vld [vmem:[%s139 + $0x2b4] sm:$0xf]
        %v286 = vld [vmem:[%s139 + $0x2b8] sm:$0xff]
        %v287 = vld [vmem:[%s139 + $0x2c0] sm:$0xf]
        %v288 = vld [vmem:[%s139 + $0x2c4] sm:$0xff]
        %v289 = vld [vmem:[%s139 + $0x2cc] sm:$0xf]
        %v290 = vld [vmem:[%s139 + $0x2d0] sm:$0xff]
        %v291 = vld [vmem:[%s139 + $0x2d8] sm:$0xf]
        %v292 = vld [vmem:[%s139 + $0x2dc] sm:$0xff]
        %v293 = vld [vmem:[%s139 + $0x2e4] sm:$0xf]
        %v294 = vld [vmem:[%s139 + $0x2e8] sm:$0xff]
        %v295 = vld [vmem:[%s139 + $0x2f0] sm:$0xf]
        %v296 = vld [vmem:[%s139 + $0x2f4] sm:$0xff]
        %v297 = vld [vmem:[%s139 + $0x2fc] sm:$0xf]
        %v298 = vld [vmem:[%s139 + $0x300] sm:$0xff]
        %v299 = vld [vmem:[%s139 + $0x308] sm:$0xf]
        %v300 = vld [vmem:[%s139 + $0x30c] sm:$0xff]
        %v301 = vld [vmem:[%s139 + $0x314] sm:$0xf]
        %v302 = vld [vmem:[%s139 + $0x318] sm:$0xff]
        %v303 = vld [vmem:[%s139 + $0x320] sm:$0xf]
        %v304 = vld [vmem:[%s139 + $0x324] sm:$0xff]
        %v305 = vld [vmem:[%s139 + $0x32c] sm:$0xf]
        %v306 = vld [vmem:[%s139 + $0x330] sm:$0xff]
        %v307 = vld [vmem:[%s139 + $0x338] sm:$0xf]
        %v308 = vld [vmem:[%s139 + $0x33c] sm:$0xff]
        %v309 = vld [vmem:[%s139 + $0x344] sm:$0xf]
        %v310 = vld [vmem:[%s139 + $0x348] sm:$0xff]
        %v311 = vld [vmem:[%s139 + $0x350] sm:$0xf]
        %v312 = vld [vmem:[%s139 + $0x354] sm:$0xff]
        %v313 = vld [vmem:[%s139 + $0x35c] sm:$0xf]
        %v314 = vld [vmem:[%s139 + $0x360] sm:$0xff]
        %v315 = vld [vmem:[%s139 + $0x368] sm:$0xf]
        %v316 = vld [vmem:[%s139 + $0x36c] sm:$0xff]
        %v317 = vld [vmem:[%s139 + $0x374] sm:$0xf]
        %v318 = vld [vmem:[%s139 + $0x378] sm:$0xff]
        %v319 = vld [vmem:[%s139 + $0x380] sm:$0xf]
        %v320 = vld [vmem:[%s139 + $0x384] sm:$0xff]
        %v321 = vld [vmem:[%s139 + $0x38c] sm:$0xf]
        %v322 = vld [vmem:[%s139 + $0x390] sm:$0xff]
        %v323 = vld [vmem:[%s139 + $0x398] sm:$0xf]
        %v324 = vld [vmem:[%s139 + $0x39c] sm:$0xff]
        %v325 = vld [vmem:[%s139 + $0x3a4] sm:$0xf]
        %v326 = vld [vmem:[%s139 + $0x3a8] sm:$0xff]
        %v327 = vld [vmem:[%s139 + $0x3b0] sm:$0xf]
        %v328 = vld [vmem:[%s139 + $0x3b4] sm:$0xff]
        %v329 = vld [vmem:[%s139 + $0x3bc] sm:$0xf]
        %v330 = vld [vmem:[%s139 + $0x3c0] sm:$0xff]
        %v331 = vld [vmem:[%s139 + $0x3c8] sm:$0xf]
        %v332 = vld [vmem:[%s139 + $0x3cc] sm:$0xff]
        %v333 = vld [vmem:[%s139 + $0x3d4] sm:$0xf]
        %v334 = vld [vmem:[%s139 + $0x3d8] sm:$0xff]
        %v335 = vld [vmem:[%s139 + $0x3e0] sm:$0xf]
        %v336 = vld [vmem:[%s139 + $0x3e4] sm:$0xff]
        %v337 = vld [vmem:[%s139 + $0x3ec] sm:$0xf]
        %v338 = vld [vmem:[%s139 + $0x3f0] sm:$0xff]
        %v339 = vld [vmem:[%s139 + $0x3f8] sm:$0xf]
        %v340 = vld [vmem:[%s139 + $0x3fc] sm:$0xff]
        %v341 = vld [vmem:[%s139 + $0x404] sm:$0xf]
        %v342 = vld [vmem:[%s139 + $0x408] sm:$0xff]
        %v343 = vld [vmem:[%s139 + $0x410] sm:$0xf]
        %v344 = vld [vmem:[%s139 + $0x414] sm:$0xff]
        %v345 = vld [vmem:[%s139 + $0x41c] sm:$0xf]
        %v346 = vld [vmem:[%s139 + $0x420] sm:$0xff]
        %v347 = vld [vmem:[%s139 + $0x428] sm:$0xf]
        %v348 = vld [vmem:[%s139 + $0x42c] sm:$0xff]
        %v349 = vld [vmem:[%s139 + $0x434] sm:$0xf]
        %v350 = vld [vmem:[%s139 + $0x438] sm:$0xff]
        %v351 = vld [vmem:[%s139 + $0x440] sm:$0xf]
        %v352 = vld [vmem:[%s139 + $0x444] sm:$0xff]
        %v353 = vld [vmem:[%s139 + $0x44c] sm:$0xf]
        %v354 = vld [vmem:[%s139 + $0x450] sm:$0xff]
        %v355 = vld [vmem:[%s139 + $0x458] sm:$0xf]
        %v356 = vld [vmem:[%s139 + $0x45c] sm:$0xff]
        %v357 = vld [vmem:[%s139 + $0x464] sm:$0xf]
        %v358 = vld [vmem:[%s139 + $0x468] sm:$0xff]
        %v359 = vld [vmem:[%s139 + $0x470] sm:$0xf]
        %v360 = vld [vmem:[%s139 + $0x474] sm:$0xff]
        %v361 = vld [vmem:[%s139 + $0x47c] sm:$0xf]
        %v362 = vld [vmem:[%s139 + $0x480] sm:$0xff]
        %v363 = vld [vmem:[%s139 + $0x488] sm:$0xf]
        %v364 = vld [vmem:[%s139 + $0x48c] sm:$0xff]
        %v365 = vld [vmem:[%s139 + $0x494] sm:$0xf]
        %v366 = vld [vmem:[%s139 + $0x498] sm:$0xff]
        %v367 = vld [vmem:[%s139 + $0x4a0] sm:$0xf]
        %v368 = vld [vmem:[%s139 + $0x4a4] sm:$0xff]
        %v369 = vld [vmem:[%s139 + $0x4ac] sm:$0xf]
        %v370 = vld [vmem:[%s139 + $0x4b0] sm:$0xff]
        %v371 = vld [vmem:[%s139 + $0x4b8] sm:$0xf]
        %v372 = vld [vmem:[%s139 + $0x4bc] sm:$0xff]
        %v373 = vld [vmem:[%s139 + $0x4c4] sm:$0xf]
        %v374 = vld [vmem:[%s139 + $0x4c8] sm:$0xff]
        %v375 = vld [vmem:[%s139 + $0x4d0] sm:$0xf]
        %v376 = vld [vmem:[%s139 + $0x4d4] sm:$0xff]
        %v377 = vld [vmem:[%s139 + $0x4dc] sm:$0xf]
        %v378 = vld [vmem:[%s139 + $0x4e0] sm:$0xff]
        %v379 = vld [vmem:[%s139 + $0x4e8] sm:$0xf]
        %v380 = vld [vmem:[%s139 + $0x4ec] sm:$0xff]
        %v381 = vld [vmem:[%s139 + $0x4f4] sm:$0xf]
        %v382 = vld [vmem:[%s139 + $0x4f8] sm:$0xff]
        %v383 = vld [vmem:[%s139 + $0x500] sm:$0xf]
        %v384 = vld [vmem:[%s139 + $0x504] sm:$0xff]
        %v385 = vld [vmem:[%s139 + $0x50c] sm:$0xf]
        %v386 = vld [vmem:[%s139 + $0x510] sm:$0xff]
        %v387 = vld [vmem:[%s139 + $0x518] sm:$0xf]
        %v388 = vld [vmem:[%s139 + $0x51c] sm:$0xff]
        %v389 = vld [vmem:[%s139 + $0x524] sm:$0xf]
        %v390 = vld [vmem:[%s139 + $0x528] sm:$0xff]
        %v391 = vld [vmem:[%s139 + $0x530] sm:$0xf]
        %v392 = vld [vmem:[%s139 + $0x534] sm:$0xff]
        %v393 = vld [vmem:[%s139 + $0x53c] sm:$0xf]
        %v394 = vld [vmem:[%s139 + $0x540] sm:$0xff]
        %v395 = vld [vmem:[%s139 + $0x548] sm:$0xf]
        %v396 = vld [vmem:[%s139 + $0x54c] sm:$0xff]
        %v397 = vld [vmem:[%s139 + $0x554] sm:$0xf]
        %v398 = vld [vmem:[%s139 + $0x558] sm:$0xff]
        %v399 = vld [vmem:[%s139 + $0x560] sm:$0xf]
        %v400 = vld [vmem:[%s139 + $0x564] sm:$0xff]
        %v401 = vld [vmem:[%s139 + $0x56c] sm:$0xf]
        %v402 = vld [vmem:[%s139 + $0x570] sm:$0xff]
        %v403 = vld [vmem:[%s139 + $0x578] sm:$0xf]
        %v404 = vld [vmem:[%s139 + $0x57c] sm:$0xff]
        %v405 = vld [vmem:[%s139 + $0x584] sm:$0xf]
        %v406 = vld [vmem:[%s139 + $0x588] sm:$0xff]
        %v407 = vld [vmem:[%s139 + $0x590] sm:$0xf]
        %v408 = vld [vmem:[%s139 + $0x594] sm:$0xff]
        %v409 = vld [vmem:[%s139 + $0x59c] sm:$0xf]
        %v410 = vld [vmem:[%s139 + $0x5a0] sm:$0xff]
        %v411 = vld [vmem:[%s139 + $0x5a8] sm:$0xf]
        %v412 = vld [vmem:[%s139 + $0x5ac] sm:$0xff]
        %v413 = vld [vmem:[%s139 + $0x5b4] sm:$0xf]
        %v414 = vld [vmem:[%s139 + $0x5b8] sm:$0xff]
        %v415 = vld [vmem:[%s139 + $0x5c0] sm:$0xf]
        %v416 = vld [vmem:[%s139 + $0x5c4] sm:$0xff]
        %v417 = vld [vmem:[%s139 + $0x5cc] sm:$0xf]
        %v418 = vld [vmem:[%s139 + $0x5d0] sm:$0xff]
        %v419 = vld [vmem:[%s139 + $0x5d8] sm:$0xf]
        %v420 = vld [vmem:[%s139 + $0x5dc] sm:$0xff]
        %v421 = vld [vmem:[%s139 + $0x5e4] sm:$0xf]
        %v422 = vld [vmem:[%s139 + $0x5e8] sm:$0xff]
        %v423 = vld [vmem:[%s139 + $0x5f0] sm:$0xf]
        %v424 = vld [vmem:[%s139 + $0x5f4] sm:$0xff]
        %v425 = vld [vmem:[%s139 + $0x5fc] sm:$0xf]
        %v434 = vunpack.c.l.b16 %v162
        %v435 = vunpack.c.h.b16 %v162
        %v436 = vunpack.c.l.b16 %v163
        %v437 = vunpack.c.h.b16 %v163
        %v438 = vunpack.c.l.b16 %v164
        %v439 = vunpack.c.h.b16 %v164
        %v440 = vunpack.c.l.b16 %v165
        %v441 = vunpack.c.h.b16 %v165
        %v442 = vunpack.c.l.b16 %v166
        %v443 = vunpack.c.h.b16 %v166
        %v444 = vunpack.c.l.b16 %v167
        %v445 = vunpack.c.h.b16 %v167
        %v446 = vunpack.c.l.b16 %v168
        %v447 = vunpack.c.h.b16 %v168
        %v448 = vunpack.c.l.b16 %v169
        %v449 = vunpack.c.h.b16 %v169
        %v450 = vpack.c.b16 %v442, %v434
        %v451 = vpack.c.b16 %v443, %v435
        %v452 = vpack.c.b16 %v444, %v436
        %v453 = vpack.c.b16 %v445, %v437
        %v454 = vpack.c.b16 %v446, %v438
        %v455 = vpack.c.b16 %v447, %v439
        %v456 = vpack.c.b16 %v448, %v440
        %v457 = vpack.c.b16 %v449, %v441
        %v722 = vunpack.c.l.b16 %v170
        %v723 = vunpack.c.h.b16 %v170
        %v724 = vunpack.c.l.b16 %v171
        %v725 = vunpack.c.l.b16 %v172
        %v726 = vunpack.c.h.b16 %v172
        %v727 = vunpack.c.l.b16 %v173
        %v728 = vunpack.c.l.b16 %v174
        %v729 = vunpack.c.h.b16 %v174
        %v730 = vunpack.c.l.b16 %v175
        %v731 = vunpack.c.l.b16 %v176
        %v732 = vunpack.c.h.b16 %v176
        %v733 = vunpack.c.l.b16 %v177
        %v734 = vunpack.c.l.b16 %v178
        %v735 = vunpack.c.h.b16 %v178
        %v736 = vunpack.c.l.b16 %v179
        %v737 = vunpack.c.l.b16 %v180
        %v738 = vunpack.c.h.b16 %v180
        %v739 = vunpack.c.l.b16 %v181
        %v740 = vunpack.c.l.b16 %v182
        %v741 = vunpack.c.h.b16 %v182
        %v742 = vunpack.c.l.b16 %v183
        %v743 = vunpack.c.l.b16 %v184
        %v744 = vunpack.c.h.b16 %v184
        %v745 = vunpack.c.l.b16 %v185
        %v746 = vunpack.c.l.b16 %v186
        %v747 = vunpack.c.h.b16 %v186
        %v748 = vunpack.c.l.b16 %v187
        %v749 = vunpack.c.l.b16 %v188
        %v750 = vunpack.c.h.b16 %v188
        %v751 = vunpack.c.l.b16 %v189
        %v752 = vunpack.c.l.b16 %v190
        %v753 = vunpack.c.h.b16 %v190
        %v754 = vunpack.c.l.b16 %v191
        %v755 = vunpack.c.l.b16 %v192
        %v756 = vunpack.c.h.b16 %v192
        %v757 = vunpack.c.l.b16 %v193
        %v758 = vunpack.c.l.b16 %v194
        %v759 = vunpack.c.h.b16 %v194
        %v760 = vunpack.c.l.b16 %v195
        %v761 = vunpack.c.l.b16 %v196
        %v762 = vunpack.c.h.b16 %v196
        %v763 = vunpack.c.l.b16 %v197
        %v764 = vunpack.c.l.b16 %v198
        %v765 = vunpack.c.h.b16 %v198
        %v766 = vunpack.c.l.b16 %v199
        %v767 = vunpack.c.l.b16 %v200
        %v768 = vunpack.c.h.b16 %v200
        %v769 = vunpack.c.l.b16 %v201
        %v770 = vunpack.c.l.b16 %v202
        %v771 = vunpack.c.h.b16 %v202
        %v772 = vunpack.c.l.b16 %v203
        %v773 = vunpack.c.l.b16 %v204
        %v774 = vunpack.c.h.b16 %v204
        %v775 = vunpack.c.l.b16 %v205
        %v776 = vunpack.c.l.b16 %v206
        %v777 = vunpack.c.h.b16 %v206
        %v778 = vunpack.c.l.b16 %v207
        %v779 = vunpack.c.l.b16 %v208
        %v780 = vunpack.c.h.b16 %v208
        %v781 = vunpack.c.l.b16 %v209
        %v782 = vunpack.c.l.b16 %v210
        %v783 = vunpack.c.h.b16 %v210
        %v784 = vunpack.c.l.b16 %v211
        %v785 = vunpack.c.l.b16 %v212
        %v786 = vunpack.c.h.b16 %v212
        %v787 = vunpack.c.l.b16 %v213
        %v788 = vunpack.c.l.b16 %v214
        %v789 = vunpack.c.h.b16 %v214
        %v790 = vunpack.c.l.b16 %v215
        %v791 = vunpack.c.l.b16 %v216
        %v792 = vunpack.c.h.b16 %v216
        %v793 = vunpack.c.l.b16 %v217
        %v794 = vunpack.c.l.b16 %v218
        %v795 = vunpack.c.h.b16 %v218
        %v796 = vunpack.c.l.b16 %v219
        %v797 = vunpack.c.l.b16 %v220
        %v798 = vunpack.c.h.b16 %v220
        %v799 = vunpack.c.l.b16 %v221
        %v800 = vunpack.c.l.b16 %v222
        %v801 = vunpack.c.h.b16 %v222
        %v802 = vunpack.c.l.b16 %v223
        %v803 = vunpack.c.l.b16 %v224
        %v804 = vunpack.c.h.b16 %v224
        %v805 = vunpack.c.l.b16 %v225
        %v806 = vunpack.c.l.b16 %v226
        %v807 = vunpack.c.h.b16 %v226
        %v808 = vunpack.c.l.b16 %v227
        %v809 = vunpack.c.l.b16 %v228
        %v810 = vunpack.c.h.b16 %v228
        %v811 = vunpack.c.l.b16 %v229
        %v812 = vunpack.c.l.b16 %v230
        %v813 = vunpack.c.h.b16 %v230
        %v814 = vunpack.c.l.b16 %v231
        %v815 = vunpack.c.l.b16 %v232
        %v816 = vunpack.c.h.b16 %v232
        %v817 = vunpack.c.l.b16 %v233
        %v818 = vunpack.c.l.b16 %v234
        %v819 = vunpack.c.h.b16 %v234
        %v820 = vunpack.c.l.b16 %v235
        %v821 = vunpack.c.l.b16 %v236
        %v822 = vunpack.c.h.b16 %v236
        %v823 = vunpack.c.l.b16 %v237
        %v824 = vunpack.c.l.b16 %v238
        %v825 = vunpack.c.h.b16 %v238
        %v826 = vunpack.c.l.b16 %v239
        %v827 = vunpack.c.l.b16 %v240
        %v828 = vunpack.c.h.b16 %v240
        %v829 = vunpack.c.l.b16 %v241
        %v830 = vunpack.c.l.b16 %v242
        %v831 = vunpack.c.h.b16 %v242
        %v832 = vunpack.c.l.b16 %v243
        %v833 = vunpack.c.l.b16 %v244
        %v834 = vunpack.c.h.b16 %v244
        %v835 = vunpack.c.l.b16 %v245
        %v836 = vunpack.c.l.b16 %v246
        %v837 = vunpack.c.h.b16 %v246
        %v838 = vunpack.c.l.b16 %v247
        %v839 = vunpack.c.l.b16 %v248
        %v840 = vunpack.c.h.b16 %v248
        %v841 = vunpack.c.l.b16 %v249
        %v842 = vunpack.c.l.b16 %v250
        %v843 = vunpack.c.h.b16 %v250
        %v844 = vunpack.c.l.b16 %v251
        %v845 = vunpack.c.l.b16 %v252
        %v846 = vunpack.c.h.b16 %v252
        %v847 = vunpack.c.l.b16 %v253
        %v848 = vunpack.c.l.b16 %v254
        %v849 = vunpack.c.h.b16 %v254
        %v850 = vunpack.c.l.b16 %v255
        %v851 = vunpack.c.l.b16 %v256
        %v852 = vunpack.c.h.b16 %v256
        %v853 = vunpack.c.l.b16 %v257
        %v854 = vunpack.c.l.b16 %v258
        %v855 = vunpack.c.h.b16 %v258
        %v856 = vunpack.c.l.b16 %v259
        %v857 = vunpack.c.l.b16 %v260
        %v858 = vunpack.c.h.b16 %v260
        %v859 = vunpack.c.l.b16 %v261
        %v860 = vunpack.c.l.b16 %v262
        %v861 = vunpack.c.h.b16 %v262
        %v862 = vunpack.c.l.b16 %v263
        %v863 = vunpack.c.l.b16 %v264
        %v864 = vunpack.c.h.b16 %v264
        %v865 = vunpack.c.l.b16 %v265
        %v866 = vunpack.c.l.b16 %v266
        %v867 = vunpack.c.h.b16 %v266
        %v868 = vunpack.c.l.b16 %v267
        %v869 = vunpack.c.l.b16 %v268
        %v870 = vunpack.c.h.b16 %v268
        %v871 = vunpack.c.l.b16 %v269
        %v872 = vunpack.c.l.b16 %v270
        %v873 = vunpack.c.h.b16 %v270
        %v874 = vunpack.c.l.b16 %v271
        %v875 = vunpack.c.l.b16 %v272
        %v876 = vunpack.c.h.b16 %v272
        %v877 = vunpack.c.l.b16 %v273
        %v878 = vunpack.c.l.b16 %v274
        %v879 = vunpack.c.h.b16 %v274
        %v880 = vunpack.c.l.b16 %v275
        %v881 = vunpack.c.l.b16 %v276
        %v882 = vunpack.c.h.b16 %v276
        %v883 = vunpack.c.l.b16 %v277
        %v884 = vunpack.c.l.b16 %v278
        %v885 = vunpack.c.h.b16 %v278
        %v886 = vunpack.c.l.b16 %v279
        %v887 = vunpack.c.l.b16 %v280
        %v888 = vunpack.c.h.b16 %v280
        %v889 = vunpack.c.l.b16 %v281
        %v890 = vunpack.c.l.b16 %v282
        %v891 = vunpack.c.h.b16 %v282
        %v892 = vunpack.c.l.b16 %v283
        %v893 = vunpack.c.l.b16 %v284
        %v894 = vunpack.c.h.b16 %v284
        %v895 = vunpack.c.l.b16 %v285
        %v896 = vunpack.c.l.b16 %v286
        %v897 = vunpack.c.h.b16 %v286
        %v898 = vunpack.c.l.b16 %v287
        %v899 = vunpack.c.l.b16 %v288
        %v900 = vunpack.c.h.b16 %v288
        %v901 = vunpack.c.l.b16 %v289
        %v902 = vunpack.c.l.b16 %v290
        %v903 = vunpack.c.h.b16 %v290
        %v904 = vunpack.c.l.b16 %v291
        %v905 = vunpack.c.l.b16 %v292
        %v906 = vunpack.c.h.b16 %v292
        %v907 = vunpack.c.l.b16 %v293
        %v908 = vunpack.c.l.b16 %v294
        %v909 = vunpack.c.h.b16 %v294
        %v910 = vunpack.c.l.b16 %v295
        %v911 = vunpack.c.l.b16 %v296
        %v912 = vunpack.c.h.b16 %v296
        %v913 = vunpack.c.l.b16 %v297
        %v914 = vunpack.c.l.b16 %v298
        %v915 = vunpack.c.h.b16 %v298
        %v916 = vunpack.c.l.b16 %v299
        %v917 = vunpack.c.l.b16 %v300
        %v918 = vunpack.c.h.b16 %v300
        %v919 = vunpack.c.l.b16 %v301
        %v920 = vunpack.c.l.b16 %v302
        %v921 = vunpack.c.h.b16 %v302
        %v922 = vunpack.c.l.b16 %v303
        %v923 = vunpack.c.l.b16 %v304
        %v924 = vunpack.c.h.b16 %v304
        %v925 = vunpack.c.l.b16 %v305
        %v926 = vunpack.c.l.b16 %v306
        %v927 = vunpack.c.h.b16 %v306
        %v928 = vunpack.c.l.b16 %v307
        %v929 = vunpack.c.l.b16 %v308
        %v930 = vunpack.c.h.b16 %v308
        %v931 = vunpack.c.l.b16 %v309
        %v932 = vunpack.c.l.b16 %v310
        %v933 = vunpack.c.h.b16 %v310
        %v934 = vunpack.c.l.b16 %v311
        %v935 = vunpack.c.l.b16 %v312
        %v936 = vunpack.c.h.b16 %v312
        %v937 = vunpack.c.l.b16 %v313
        %v938 = vunpack.c.l.b16 %v314
        %v939 = vunpack.c.h.b16 %v314
        %v940 = vunpack.c.l.b16 %v315
        %v941 = vunpack.c.l.b16 %v316
        %v942 = vunpack.c.h.b16 %v316
        %v943 = vunpack.c.l.b16 %v317
        %v944 = vunpack.c.l.b16 %v318
        %v945 = vunpack.c.h.b16 %v318
        %v946 = vunpack.c.l.b16 %v319
        %v947 = vunpack.c.l.b16 %v320
        %v948 = vunpack.c.h.b16 %v320
        %v949 = vunpack.c.l.b16 %v321
        %v950 = vunpack.c.l.b16 %v322
        %v951 = vunpack.c.h.b16 %v322
        %v952 = vunpack.c.l.b16 %v323
        %v953 = vunpack.c.l.b16 %v324
        %v954 = vunpack.c.h.b16 %v324
        %v955 = vunpack.c.l.b16 %v325
        %v956 = vunpack.c.l.b16 %v326
        %v957 = vunpack.c.h.b16 %v326
        %v958 = vunpack.c.l.b16 %v327
        %v959 = vunpack.c.l.b16 %v328
        %v960 = vunpack.c.h.b16 %v328
        %v961 = vunpack.c.l.b16 %v329
        %v962 = vunpack.c.l.b16 %v330
        %v963 = vunpack.c.h.b16 %v330
        %v964 = vunpack.c.l.b16 %v331
        %v965 = vunpack.c.l.b16 %v332
        %v966 = vunpack.c.h.b16 %v332
        %v967 = vunpack.c.l.b16 %v333
        %v968 = vunpack.c.l.b16 %v334
        %v969 = vunpack.c.h.b16 %v334
        %v970 = vunpack.c.l.b16 %v335
        %v971 = vunpack.c.l.b16 %v336
        %v972 = vunpack.c.h.b16 %v336
        %v973 = vunpack.c.l.b16 %v337
        %v974 = vunpack.c.l.b16 %v338
        %v975 = vunpack.c.h.b16 %v338
        %v976 = vunpack.c.l.b16 %v339
        %v977 = vunpack.c.l.b16 %v340
        %v978 = vunpack.c.h.b16 %v340
        %v979 = vunpack.c.l.b16 %v341
        %v980 = vunpack.c.l.b16 %v342
        %v981 = vunpack.c.h.b16 %v342
        %v982 = vunpack.c.l.b16 %v343
        %v983 = vunpack.c.l.b16 %v344
        %v984 = vunpack.c.h.b16 %v344
        %v985 = vunpack.c.l.b16 %v345
        %v986 = vunpack.c.l.b16 %v346
        %v987 = vunpack.c.h.b16 %v346
        %v988 = vunpack.c.l.b16 %v347
        %v989 = vunpack.c.l.b16 %v348
        %v990 = vunpack.c.h.b16 %v348
        %v991 = vunpack.c.l.b16 %v349
        %v992 = vunpack.c.l.b16 %v350
        %v993 = vunpack.c.h.b16 %v350
        %v994 = vunpack.c.l.b16 %v351
        %v995 = vunpack.c.l.b16 %v352
        %v996 = vunpack.c.h.b16 %v352
        %v997 = vunpack.c.l.b16 %v353
        %v998 = vunpack.c.l.b16 %v354
        %v999 = vunpack.c.h.b16 %v354
        %v1000 = vunpack.c.l.b16 %v355
        %v1001 = vunpack.c.l.b16 %v356
        %v1002 = vunpack.c.h.b16 %v356
        %v1003 = vunpack.c.l.b16 %v357
        %v1004 = vunpack.c.l.b16 %v358
        %v1005 = vunpack.c.h.b16 %v358
        %v1006 = vunpack.c.l.b16 %v359
        %v1007 = vunpack.c.l.b16 %v360
        %v1008 = vunpack.c.h.b16 %v360
        %v1009 = vunpack.c.l.b16 %v361
        %v1010 = vunpack.c.l.b16 %v362
        %v1011 = vunpack.c.h.b16 %v362
        %v1012 = vunpack.c.l.b16 %v363
        %v1013 = vunpack.c.l.b16 %v364
        %v1014 = vunpack.c.h.b16 %v364
        %v1015 = vunpack.c.l.b16 %v365
        %v1016 = vunpack.c.l.b16 %v366
        %v1017 = vunpack.c.h.b16 %v366
        %v1018 = vunpack.c.l.b16 %v367
        %v1019 = vunpack.c.l.b16 %v368
        %v1020 = vunpack.c.h.b16 %v368
        %v1021 = vunpack.c.l.b16 %v369
        %v1022 = vunpack.c.l.b16 %v370
        %v1023 = vunpack.c.h.b16 %v370
        %v1024 = vunpack.c.l.b16 %v371
        %v1025 = vunpack.c.l.b16 %v372
        %v1026 = vunpack.c.h.b16 %v372
        %v1027 = vunpack.c.l.b16 %v373
        %v1028 = vunpack.c.l.b16 %v374
        %v1029 = vunpack.c.h.b16 %v374
        %v1030 = vunpack.c.l.b16 %v375
        %v1031 = vunpack.c.l.b16 %v376
        %v1032 = vunpack.c.h.b16 %v376
        %v1033 = vunpack.c.l.b16 %v377
        %v1034 = vunpack.c.l.b16 %v378
        %v1035 = vunpack.c.h.b16 %v378
        %v1036 = vunpack.c.l.b16 %v379
        %v1037 = vunpack.c.l.b16 %v380
        %v1038 = vunpack.c.h.b16 %v380
        %v1039 = vunpack.c.l.b16 %v381
        %v1040 = vunpack.c.l.b16 %v382
        %v1041 = vunpack.c.h.b16 %v382
        %v1042 = vunpack.c.l.b16 %v383
        %v1043 = vunpack.c.l.b16 %v384
        %v1044 = vunpack.c.h.b16 %v384
        %v1045 = vunpack.c.l.b16 %v385
        %v1046 = vunpack.c.l.b16 %v386
        %v1047 = vunpack.c.h.b16 %v386
        %v1048 = vunpack.c.l.b16 %v387
        %v1049 = vunpack.c.l.b16 %v388
        %v1050 = vunpack.c.h.b16 %v388
        %v1051 = vunpack.c.l.b16 %v389
        %v1052 = vunpack.c.l.b16 %v390
        %v1053 = vunpack.c.h.b16 %v390
        %v1054 = vunpack.c.l.b16 %v391
        %v1055 = vunpack.c.l.b16 %v392
        %v1056 = vunpack.c.h.b16 %v392
        %v1057 = vunpack.c.l.b16 %v393
        %v1058 = vunpack.c.l.b16 %v394
        %v1059 = vunpack.c.h.b16 %v394
        %v1060 = vunpack.c.l.b16 %v395
        %v1061 = vunpack.c.l.b16 %v396
        %v1062 = vunpack.c.h.b16 %v396
        %v1063 = vunpack.c.l.b16 %v397
        %v1064 = vunpack.c.l.b16 %v398
        %v1065 = vunpack.c.h.b16 %v398
        %v1066 = vunpack.c.l.b16 %v399
        %v1067 = vunpack.c.l.b16 %v400
        %v1068 = vunpack.c.h.b16 %v400
        %v1069 = vunpack.c.l.b16 %v401
        %v1070 = vunpack.c.l.b16 %v402
        %v1071 = vunpack.c.h.b16 %v402
        %v1072 = vunpack.c.l.b16 %v403
        %v1073 = vunpack.c.l.b16 %v404
        %v1074 = vunpack.c.h.b16 %v404
        %v1075 = vunpack.c.l.b16 %v405
        %v1076 = vunpack.c.l.b16 %v406
        %v1077 = vunpack.c.h.b16 %v406
        %v1078 = vunpack.c.l.b16 %v407
        %v1079 = vunpack.c.l.b16 %v408
        %v1080 = vunpack.c.h.b16 %v408
        %v1081 = vunpack.c.l.b16 %v409
        %v1082 = vunpack.c.l.b16 %v410
        %v1083 = vunpack.c.h.b16 %v410
        %v1084 = vunpack.c.l.b16 %v411
        %v1085 = vunpack.c.l.b16 %v412
        %v1086 = vunpack.c.h.b16 %v412
        %v1087 = vunpack.c.l.b16 %v413
        %v1088 = vunpack.c.l.b16 %v414
        %v1089 = vunpack.c.h.b16 %v414
        %v1090 = vunpack.c.l.b16 %v415
        %v1091 = vunpack.c.l.b16 %v416
        %v1092 = vunpack.c.h.b16 %v416
        %v1093 = vunpack.c.l.b16 %v417
        %v1094 = vunpack.c.l.b16 %v418
        %v1095 = vunpack.c.h.b16 %v418
        %v1096 = vunpack.c.l.b16 %v419
        %v1097 = vunpack.c.l.b16 %v420
        %v1098 = vunpack.c.h.b16 %v420
        %v1099 = vunpack.c.l.b16 %v421
        %v1100 = vunpack.c.l.b16 %v422
        %v1101 = vunpack.c.h.b16 %v422
        %v1102 = vunpack.c.l.b16 %v423
        %v1103 = vunpack.c.l.b16 %v424
        %v1104 = vunpack.c.h.b16 %v424
        %v1105 = vunpack.c.l.b16 %v425
        %v1106 = vpack.c.b16 %v725, %v722
        %v1107 = vpack.c.b16 %v726, %v723
        %v1108 = vpack.c.b16 %v727, %v724
        %v1109 = vpack.c.b16 %v731, %v728
        %v1110 = vpack.c.b16 %v732, %v729
        %v1111 = vpack.c.b16 %v733, %v730
        %v1112 = vpack.c.b16 %v737, %v734
        %v1113 = vpack.c.b16 %v738, %v735
        %v1114 = vpack.c.b16 %v739, %v736
        %v1115 = vpack.c.b16 %v743, %v740
        %v1116 = vpack.c.b16 %v744, %v741
        %v1117 = vpack.c.b16 %v745, %v742
        %v1118 = vpack.c.b16 %v749, %v746
        %v1119 = vpack.c.b16 %v750, %v747
        %v1120 = vpack.c.b16 %v751, %v748
        %v1121 = vpack.c.b16 %v755, %v752
        %v1122 = vpack.c.b16 %v756, %v753
        %v1123 = vpack.c.b16 %v757, %v754
        %v1124 = vpack.c.b16 %v761, %v758
        %v1125 = vpack.c.b16 %v762, %v759
        %v1126 = vpack.c.b16 %v763, %v760
        %v1127 = vpack.c.b16 %v767, %v764
        %v1128 = vpack.c.b16 %v768, %v765
        %v1129 = vpack.c.b16 %v769, %v766
        %v1130 = vpack.c.b16 %v773, %v770
        %v1131 = vpack.c.b16 %v774, %v771
        %v1132 = vpack.c.b16 %v775, %v772
        %v1133 = vpack.c.b16 %v779, %v776
        %v1134 = vpack.c.b16 %v780, %v777
        %v1135 = vpack.c.b16 %v781, %v778
        %v1136 = vpack.c.b16 %v785, %v782
        %v1137 = vpack.c.b16 %v786, %v783
        %v1138 = vpack.c.b16 %v787, %v784
        %v1139 = vpack.c.b16 %v791, %v788
        %v1140 = vpack.c.b16 %v792, %v789
        %v1141 = vpack.c.b16 %v793, %v790
        %v1142 = vpack.c.b16 %v797, %v794
        %v1143 = vpack.c.b16 %v798, %v795
        %v1144 = vpack.c.b16 %v799, %v796
        %v1145 = vpack.c.b16 %v803, %v800
        %v1146 = vpack.c.b16 %v804, %v801
        %v1147 = vpack.c.b16 %v805, %v802
        %v1148 = vpack.c.b16 %v809, %v806
        %v1149 = vpack.c.b16 %v810, %v807
        %v1150 = vpack.c.b16 %v811, %v808
        %v1151 = vpack.c.b16 %v815, %v812
        %v1152 = vpack.c.b16 %v816, %v813
        %v1153 = vpack.c.b16 %v817, %v814
        %v1154 = vpack.c.b16 %v821, %v818
        %v1155 = vpack.c.b16 %v822, %v819
        %v1156 = vpack.c.b16 %v823, %v820
        %v1157 = vpack.c.b16 %v827, %v824
        %v1158 = vpack.c.b16 %v828, %v825
        %v1159 = vpack.c.b16 %v829, %v826
        %v1160 = vpack.c.b16 %v833, %v830
        %v1161 = vpack.c.b16 %v834, %v831
        %v1162 = vpack.c.b16 %v835, %v832
        %v1163 = vpack.c.b16 %v839, %v836
        %v1164 = vpack.c.b16 %v840, %v837
        %v1165 = vpack.c.b16 %v841, %v838
        %v1166 = vpack.c.b16 %v845, %v842
        %v1167 = vpack.c.b16 %v846, %v843
        %v1168 = vpack.c.b16 %v847, %v844
        %v1169 = vpack.c.b16 %v851, %v848
        %v1170 = vpack.c.b16 %v852, %v849
        %v1171 = vpack.c.b16 %v853, %v850
        %v1172 = vpack.c.b16 %v857, %v854
        %v1173 = vpack.c.b16 %v858, %v855
        %v1174 = vpack.c.b16 %v859, %v856
        %v1175 = vpack.c.b16 %v863, %v860
        %v1176 = vpack.c.b16 %v864, %v861
        %v1177 = vpack.c.b16 %v865, %v862
        %v1178 = vpack.c.b16 %v869, %v866
        %v1179 = vpack.c.b16 %v870, %v867
        %v1180 = vpack.c.b16 %v871, %v868
        %v1181 = vpack.c.b16 %v875, %v872
        %v1182 = vpack.c.b16 %v876, %v873
        %v1183 = vpack.c.b16 %v877, %v874
        %v1184 = vpack.c.b16 %v881, %v878
        %v1185 = vpack.c.b16 %v882, %v879
        %v1186 = vpack.c.b16 %v883, %v880
        %v1187 = vpack.c.b16 %v887, %v884
        %v1188 = vpack.c.b16 %v888, %v885
        %v1189 = vpack.c.b16 %v889, %v886
        %v1190 = vpack.c.b16 %v893, %v890
        %v1191 = vpack.c.b16 %v894, %v891
        %v1192 = vpack.c.b16 %v895, %v892
        %v1193 = vpack.c.b16 %v899, %v896
        %v1194 = vpack.c.b16 %v900, %v897
        %v1195 = vpack.c.b16 %v901, %v898
        %v1196 = vpack.c.b16 %v905, %v902
        %v1197 = vpack.c.b16 %v906, %v903
        %v1198 = vpack.c.b16 %v907, %v904
        %v1199 = vpack.c.b16 %v911, %v908
        %v1200 = vpack.c.b16 %v912, %v909
        %v1201 = vpack.c.b16 %v913, %v910
        %v1202 = vpack.c.b16 %v917, %v914
        %v1203 = vpack.c.b16 %v918, %v915
        %v1204 = vpack.c.b16 %v919, %v916
        %v1205 = vpack.c.b16 %v923, %v920
        %v1206 = vpack.c.b16 %v924, %v921
        %v1207 = vpack.c.b16 %v925, %v922
        %v1208 = vpack.c.b16 %v929, %v926
        %v1209 = vpack.c.b16 %v930, %v927
        %v1210 = vpack.c.b16 %v931, %v928
        %v1211 = vpack.c.b16 %v935, %v932
        %v1212 = vpack.c.b16 %v936, %v933
        %v1213 = vpack.c.b16 %v937, %v934
        %v1214 = vpack.c.b16 %v941, %v938
        %v1215 = vpack.c.b16 %v942, %v939
        %v1216 = vpack.c.b16 %v943, %v940
        %v1217 = vpack.c.b16 %v947, %v944
        %v1218 = vpack.c.b16 %v948, %v945
        %v1219 = vpack.c.b16 %v949, %v946
        %v1220 = vpack.c.b16 %v953, %v950
        %v1221 = vpack.c.b16 %v954, %v951
        %v1222 = vpack.c.b16 %v955, %v952
        %v1223 = vpack.c.b16 %v959, %v956
        %v1224 = vpack.c.b16 %v960, %v957
        %v1225 = vpack.c.b16 %v961, %v958
        %v1226 = vpack.c.b16 %v965, %v962
        %v1227 = vpack.c.b16 %v966, %v963
        %v1228 = vpack.c.b16 %v967, %v964
        %v1229 = vpack.c.b16 %v971, %v968
        %v1230 = vpack.c.b16 %v972, %v969
        %v1231 = vpack.c.b16 %v973, %v970
        %v1232 = vpack.c.b16 %v977, %v974
        %v1233 = vpack.c.b16 %v978, %v975
        %v1234 = vpack.c.b16 %v979, %v976
        %v1235 = vpack.c.b16 %v983, %v980
        %v1236 = vpack.c.b16 %v984, %v981
        %v1237 = vpack.c.b16 %v985, %v982
        %v1238 = vpack.c.b16 %v989, %v986
        %v1239 = vpack.c.b16 %v990, %v987
        %v1240 = vpack.c.b16 %v991, %v988
        %v1241 = vpack.c.b16 %v995, %v992
        %v1242 = vpack.c.b16 %v996, %v993
        %v1243 = vpack.c.b16 %v997, %v994
        %v1244 = vpack.c.b16 %v1001, %v998
        %v1245 = vpack.c.b16 %v1002, %v999
        %v1246 = vpack.c.b16 %v1003, %v1000
        %v1247 = vpack.c.b16 %v1007, %v1004
        %v1248 = vpack.c.b16 %v1008, %v1005
        %v1249 = vpack.c.b16 %v1009, %v1006
        %v1250 = vpack.c.b16 %v1013, %v1010
        %v1251 = vpack.c.b16 %v1014, %v1011
        %v1252 = vpack.c.b16 %v1015, %v1012
        %v1253 = vpack.c.b16 %v1019, %v1016
        %v1254 = vpack.c.b16 %v1020, %v1017
        %v1255 = vpack.c.b16 %v1021, %v1018
        %v1256 = vpack.c.b16 %v1025, %v1022
        %v1257 = vpack.c.b16 %v1026, %v1023
        %v1258 = vpack.c.b16 %v1027, %v1024
        %v1259 = vpack.c.b16 %v1031, %v1028
        %v1260 = vpack.c.b16 %v1032, %v1029
        %v1261 = vpack.c.b16 %v1033, %v1030
        %v1262 = vpack.c.b16 %v1037, %v1034
        %v1263 = vpack.c.b16 %v1038, %v1035
        %v1264 = vpack.c.b16 %v1039, %v1036
        %v1265 = vpack.c.b16 %v1043, %v1040
        %v1266 = vpack.c.b16 %v1044, %v1041
        %v1267 = vpack.c.b16 %v1045, %v1042
        %v1268 = vpack.c.b16 %v1049, %v1046
        %v1269 = vpack.c.b16 %v1050, %v1047
        %v1270 = vpack.c.b16 %v1051, %v1048
        %v1271 = vpack.c.b16 %v1055, %v1052
        %v1272 = vpack.c.b16 %v1056, %v1053
        %v1273 = vpack.c.b16 %v1057, %v1054
        %v1274 = vpack.c.b16 %v1061, %v1058
        %v1275 = vpack.c.b16 %v1062, %v1059
        %v1276 = vpack.c.b16 %v1063, %v1060
        %v1277 = vpack.c.b16 %v1067, %v1064
        %v1278 = vpack.c.b16 %v1068, %v1065
        %v1279 = vpack.c.b16 %v1069, %v1066
        %v1280 = vpack.c.b16 %v1073, %v1070
        %v1281 = vpack.c.b16 %v1074, %v1071
        %v1282 = vpack.c.b16 %v1075, %v1072
        %v1283 = vpack.c.b16 %v1079, %v1076
        %v1284 = vpack.c.b16 %v1080, %v1077
        %v1285 = vpack.c.b16 %v1081, %v1078
        %v1286 = vpack.c.b16 %v1085, %v1082
        %v1287 = vpack.c.b16 %v1086, %v1083
        %v1288 = vpack.c.b16 %v1087, %v1084
        %v1289 = vpack.c.b16 %v1091, %v1088
        %v1290 = vpack.c.b16 %v1092, %v1089
        %v1291 = vpack.c.b16 %v1093, %v1090
        %v1292 = vpack.c.b16 %v1097, %v1094
        %v1293 = vpack.c.b16 %v1098, %v1095
        %v1294 = vpack.c.b16 %v1099, %v1096
        %v1295 = vpack.c.b16 %v1103, %v1100
        %v1296 = vpack.c.b16 %v1104, %v1101
        %v1297 = vpack.c.b16 %v1105, %v1102
        %1490 = vmatpush.bf16.msra.mxu0 %v1127
        %1491 = vmatpush.bf16.msra.mxu0 %v1124
        %1492 = vmatpush.bf16.msra.mxu0 %v1121
        %1493 = vmatpush.bf16.msra.mxu0 %v1118
        %1494 = vmatpush.bf16.msra.mxu0 %v1115
        %1495 = vmatpush.bf16.msra.mxu0 %v1112
        %1496 = vmatpush.bf16.msra.mxu0 %v1109
        %1497 = vmatpush.bf16.msra.mxu0 %v1106
        %1498 = vmatmul.bf16.gmra.mxu0 %v450
        %v1499 = vpop.f32.mrf.mxu0
        %v1500 = vadd.f32 0.0, %v1499
        %v1501 = vpop.f32.mrf.mxu0
        %v1502 = vadd.f32 0.0, %v1501
        %1503 = vdwg.mxu0
        %1504 = vmatpush.bf16.msra.mxu0 %v1151
        %1505 = vmatpush.bf16.msra.mxu0 %v1148
        %1506 = vmatpush.bf16.msra.mxu0 %v1145
        %1507 = vmatpush.bf16.msra.mxu0 %v1142
        %1508 = vmatpush.bf16.msra.mxu0 %v1139
        %1509 = vmatpush.bf16.msra.mxu0 %v1136
        %1510 = vmatpush.bf16.msra.mxu0 %v1133
        %1511 = vmatpush.bf16.msra.mxu0 %v1130
        %1512 = vmatmul.bf16.gmra.mxu0 %v451
        %v1513 = vpop.f32.mrf.mxu0
        %v1514 = vadd.f32 %v1500, %v1513
        %v1515 = vpop.f32.mrf.mxu0
        %v1516 = vadd.f32 %v1502, %v1515
        %1517 = vdwg.mxu0
        %1518 = vmatpush.bf16.msra.mxu0 %v1175
        %1519 = vmatpush.bf16.msra.mxu0 %v1172
        %1520 = vmatpush.bf16.msra.mxu0 %v1169
        %1521 = vmatpush.bf16.msra.mxu0 %v1166
        %1522 = vmatpush.bf16.msra.mxu0 %v1163
        %1523 = vmatpush.bf16.msra.mxu0 %v1160
        %1524 = vmatpush.bf16.msra.mxu0 %v1157
        %1525 = vmatpush.bf16.msra.mxu0 %v1154
        %1526 = vmatmul.bf16.gmra.mxu0 %v452
        %v1527 = vpop.f32.mrf.mxu0
        %v1528 = vadd.f32 %v1514, %v1527
        %v1529 = vpop.f32.mrf.mxu0
        %v1530 = vadd.f32 %v1516, %v1529
        %1531 = vdwg.mxu0
        %1532 = vmatpush.bf16.msra.mxu0 %v1199
        %1533 = vmatpush.bf16.msra.mxu0 %v1196
        %1534 = vmatpush.bf16.msra.mxu0 %v1193
        %1535 = vmatpush.bf16.msra.mxu0 %v1190
        %1536 = vmatpush.bf16.msra.mxu0 %v1187
        %1537 = vmatpush.bf16.msra.mxu0 %v1184
        %1538 = vmatpush.bf16.msra.mxu0 %v1181
        %1539 = vmatpush.bf16.msra.mxu0 %v1178
        %1540 = vmatmul.bf16.gmra.mxu0 %v453
        %v1541 = vpop.f32.mrf.mxu0
        %v1542 = vadd.f32 %v1528, %v1541
        %v1543 = vpop.f32.mrf.mxu0
        %v1544 = vadd.f32 %v1530, %v1543
        %1545 = vdwg.mxu0
        %1546 = vmatpush.bf16.msra.mxu0 %v1223
        %1547 = vmatpush.bf16.msra.mxu0 %v1220
        %1548 = vmatpush.bf16.msra.mxu0 %v1217
        %1549 = vmatpush.bf16.msra.mxu0 %v1214
        %1550 = vmatpush.bf16.msra.mxu0 %v1211
        %1551 = vmatpush.bf16.msra.mxu0 %v1208
        %1552 = vmatpush.bf16.msra.mxu0 %v1205
        %1553 = vmatpush.bf16.msra.mxu0 %v1202
        %1554 = vmatmul.bf16.gmra.mxu0 %v454
        %v1555 = vpop.f32.mrf.mxu0
        %v1556 = vadd.f32 %v1542, %v1555
        %v1557 = vpop.f32.mrf.mxu0
        %v1558 = vadd.f32 %v1544, %v1557
        %1559 = vdwg.mxu0
        %1560 = vmatpush.bf16.msra.mxu0 %v1247
        %1561 = vmatpush.bf16.msra.mxu0 %v1244
        %1562 = vmatpush.bf16.msra.mxu0 %v1241
        %1563 = vmatpush.bf16.msra.mxu0 %v1238
        %1564 = vmatpush.bf16.msra.mxu0 %v1235
        %1565 = vmatpush.bf16.msra.mxu0 %v1232
        %1566 = vmatpush.bf16.msra.mxu0 %v1229
        %1567 = vmatpush.bf16.msra.mxu0 %v1226
        %1568 = vmatmul.bf16.gmra.mxu0 %v455
        %v1569 = vpop.f32.mrf.mxu0
        %v1570 = vadd.f32 %v1556, %v1569
        %v1571 = vpop.f32.mrf.mxu0
        %v1572 = vadd.f32 %v1558, %v1571
        %1573 = vdwg.mxu0
        %1574 = vmatpush.bf16.msra.mxu0 %v1271
        %1575 = vmatpush.bf16.msra.mxu0 %v1268
        %1576 = vmatpush.bf16.msra.mxu0 %v1265
        %1577 = vmatpush.bf16.msra.mxu0 %v1262
        %1578 = vmatpush.bf16.msra.mxu0 %v1259
        %1579 = vmatpush.bf16.msra.mxu0 %v1256
        %1580 = vmatpush.bf16.msra.mxu0 %v1253
        %1581 = vmatpush.bf16.msra.mxu0 %v1250
        %1582 = vmatmul.bf16.gmra.mxu0 %v456
        %v1583 = vpop.f32.mrf.mxu0
        %v1584 = vadd.f32 %v1570, %v1583
        %v1585 = vpop.f32.mrf.mxu0
        %v1586 = vadd.f32 %v1572, %v1585
        %1587 = vdwg.mxu0
        %1588 = vmatpush.bf16.msra.mxu0 %v1295
        %1589 = vmatpush.bf16.msra.mxu0 %v1292
        %1590 = vmatpush.bf16.msra.mxu0 %v1289
        %1591 = vmatpush.bf16.msra.mxu0 %v1286
        %1592 = vmatpush.bf16.msra.mxu0 %v1283
        %1593 = vmatpush.bf16.msra.mxu0 %v1280
        %1594 = vmatpush.bf16.msra.mxu0 %v1277
        %1595 = vmatpush.bf16.msra.mxu0 %v1274
        %1596 = vmatmul.bf16.gmra.mxu0 %v457
        %v1597 = vpop.f32.mrf.mxu0
        %v1598 = vadd.f32 %v1584, %v1597
        %v1599 = vpop.f32.mrf.mxu0
        %v1600 = vadd.f32 %v1586, %v1599
        %1601 = vdwg.mxu0
        %1602 = vmatpush.bf16.msra.mxu0 %v1128
        %1603 = vmatpush.bf16.msra.mxu0 %v1125
        %1604 = vmatpush.bf16.msra.mxu0 %v1122
        %1605 = vmatpush.bf16.msra.mxu0 %v1119
        %1606 = vmatpush.bf16.msra.mxu0 %v1116
        %1607 = vmatpush.bf16.msra.mxu0 %v1113
        %1608 = vmatpush.bf16.msra.mxu0 %v1110
        %1609 = vmatpush.bf16.msra.mxu0 %v1107
        %1610 = vmatmul.bf16.gmra.mxu0 %v450
        %v1611 = vpop.f32.mrf.mxu0
        %v1612 = vadd.f32 0.0, %v1611
        %v1613 = vpop.f32.mrf.mxu0
        %v1614 = vadd.f32 0.0, %v1613
        %1615 = vdwg.mxu0
        %1616 = vmatpush.bf16.msra.mxu0 %v1152
        %1617 = vmatpush.bf16.msra.mxu0 %v1149
        %1618 = vmatpush.bf16.msra.mxu0 %v1146
        %1619 = vmatpush.bf16.msra.mxu0 %v1143
        %1620 = vmatpush.bf16.msra.mxu0 %v1140
        %1621 = vmatpush.bf16.msra.mxu0 %v1137
        %1622 = vmatpush.bf16.msra.mxu0 %v1134
        %1623 = vmatpush.bf16.msra.mxu0 %v1131
        %1624 = vmatmul.bf16.gmra.mxu0 %v451
        %v1625 = vpop.f32.mrf.mxu0
        %v1626 = vadd.f32 %v1612, %v1625
        %v1627 = vpop.f32.mrf.mxu0
        %v1628 = vadd.f32 %v1614, %v1627
        %1629 = vdwg.mxu0
        %1630 = vmatpush.bf16.msra.mxu0 %v1176
        %1631 = vmatpush.bf16.msra.mxu0 %v1173
        %1632 = vmatpush.bf16.msra.mxu0 %v1170
        %1633 = vmatpush.bf16.msra.mxu0 %v1167
        %1634 = vmatpush.bf16.msra.mxu0 %v1164
        %1635 = vmatpush.bf16.msra.mxu0 %v1161
        %1636 = vmatpush.bf16.msra.mxu0 %v1158
        %1637 = vmatpush.bf16.msra.mxu0 %v1155
        %1638 = vmatmul.bf16.gmra.mxu0 %v452
        %v1639 = vpop.f32.mrf.mxu0
        %v1640 = vadd.f32 %v1626, %v1639
        %v1641 = vpop.f32.mrf.mxu0
        %v1642 = vadd.f32 %v1628, %v1641
        %1643 = vdwg.mxu0
        %1644 = vmatpush.bf16.msra.mxu0 %v1200
        %1645 = vmatpush.bf16.msra.mxu0 %v1197
        %1646 = vmatpush.bf16.msra.mxu0 %v1194
        %1647 = vmatpush.bf16.msra.mxu0 %v1191
        %1648 = vmatpush.bf16.msra.mxu0 %v1188
        %1649 = vmatpush.bf16.msra.mxu0 %v1185
        %1650 = vmatpush.bf16.msra.mxu0 %v1182
        %1651 = vmatpush.bf16.msra.mxu0 %v1179
        %1652 = vmatmul.bf16.gmra.mxu0 %v453
        %v1653 = vpop.f32.mrf.mxu0
        %v1654 = vadd.f32 %v1640, %v1653
        %v1655 = vpop.f32.mrf.mxu0
        %v1656 = vadd.f32 %v1642, %v1655
        %1657 = vdwg.mxu0
        %1658 = vmatpush.bf16.msra.mxu0 %v1224
        %1659 = vmatpush.bf16.msra.mxu0 %v1221
        %1660 = vmatpush.bf16.msra.mxu0 %v1218
        %1661 = vmatpush.bf16.msra.mxu0 %v1215
        %1662 = vmatpush.bf16.msra.mxu0 %v1212
        %1663 = vmatpush.bf16.msra.mxu0 %v1209
        %1664 = vmatpush.bf16.msra.mxu0 %v1206
        %1665 = vmatpush.bf16.msra.mxu0 %v1203
        %1666 = vmatmul.bf16.gmra.mxu0 %v454
        %v1667 = vpop.f32.mrf.mxu0
        %v1668 = vadd.f32 %v1654, %v1667
        %v1669 = vpop.f32.mrf.mxu0
        %v1670 = vadd.f32 %v1656, %v1669
        %1671 = vdwg.mxu0
        %1672 = vmatpush.bf16.msra.mxu0 %v1248
        %1673 = vmatpush.bf16.msra.mxu0 %v1245
        %1674 = vmatpush.bf16.msra.mxu0 %v1242
        %1675 = vmatpush.bf16.msra.mxu0 %v1239
        %1676 = vmatpush.bf16.msra.mxu0 %v1236
        %1677 = vmatpush.bf16.msra.mxu0 %v1233
        %1678 = vmatpush.bf16.msra.mxu0 %v1230
        %1679 = vmatpush.bf16.msra.mxu0 %v1227
        %1680 = vmatmul.bf16.gmra.mxu0 %v455
        %v1681 = vpop.f32.mrf.mxu0
        %v1682 = vadd.f32 %v1668, %v1681
        %v1683 = vpop.f32.mrf.mxu0
        %v1684 = vadd.f32 %v1670, %v1683
        %1685 = vdwg.mxu0
        %1686 = vmatpush.bf16.msra.mxu0 %v1272
        %1687 = vmatpush.bf16.msra.mxu0 %v1269
        %1688 = vmatpush.bf16.msra.mxu0 %v1266
        %1689 = vmatpush.bf16.msra.mxu0 %v1263
        %1690 = vmatpush.bf16.msra.mxu0 %v1260
        %1691 = vmatpush.bf16.msra.mxu0 %v1257
        %1692 = vmatpush.bf16.msra.mxu0 %v1254
        %1693 = vmatpush.bf16.msra.mxu0 %v1251
        %1694 = vmatmul.bf16.gmra.mxu0 %v456
        %v1695 = vpop.f32.mrf.mxu0
        %v1696 = vadd.f32 %v1682, %v1695
        %v1697 = vpop.f32.mrf.mxu0
        %v1698 = vadd.f32 %v1684, %v1697
        %1699 = vdwg.mxu0
        %1700 = vmatpush.bf16.msra.mxu0 %v1296
        %1701 = vmatpush.bf16.msra.mxu0 %v1293
        %1702 = vmatpush.bf16.msra.mxu0 %v1290
        %1703 = vmatpush.bf16.msra.mxu0 %v1287
        %1704 = vmatpush.bf16.msra.mxu0 %v1284
        %1705 = vmatpush.bf16.msra.mxu0 %v1281
        %1706 = vmatpush.bf16.msra.mxu0 %v1278
        %1707 = vmatpush.bf16.msra.mxu0 %v1275
        %1708 = vmatmul.bf16.gmra.mxu0 %v457
        %v1709 = vpop.f32.mrf.mxu0
        %v1710 = vadd.f32 %v1696, %v1709
        %v1711 = vpop.f32.mrf.mxu0
        %v1712 = vadd.f32 %v1698, %v1711
        %1713 = vdwg.mxu0
        %1714 = vmatpush.bf16.msra.mxu0 %v1129
        %1715 = vmatpush.bf16.msra.mxu0 %v1126
        %1716 = vmatpush.bf16.msra.mxu0 %v1123
        %1717 = vmatpush.bf16.msra.mxu0 %v1120
        %1718 = vmatpush.bf16.msra.mxu0 %v1117
        %1719 = vmatpush.bf16.msra.mxu0 %v1114
        %1720 = vmatpush.bf16.msra.mxu0 %v1111
        %1721 = vmatpush.bf16.msra.mxu0 %v1108
        %1722 = vmatmul.bf16.gmra.mxu0 %v450
        %v1723 = vpop.f32.mrf.mxu0
        %v1724 = vadd.f32 0.0, %v1723
        %v1725 = vpop.f32.mrf.mxu0
        %v1726 = vadd.f32 0.0, %v1725
        %1727 = vdwg.mxu0
        %1728 = vmatpush.bf16.msra.mxu0 %v1153
        %1729 = vmatpush.bf16.msra.mxu0 %v1150
        %1730 = vmatpush.bf16.msra.mxu0 %v1147
        %1731 = vmatpush.bf16.msra.mxu0 %v1144
        %1732 = vmatpush.bf16.msra.mxu0 %v1141
        %1733 = vmatpush.bf16.msra.mxu0 %v1138
        %1734 = vmatpush.bf16.msra.mxu0 %v1135
        %1735 = vmatpush.bf16.msra.mxu0 %v1132
        %1736 = vmatmul.bf16.gmra.mxu0 %v451
        %v1737 = vpop.f32.mrf.mxu0
        %v1738 = vadd.f32 %v1724, %v1737
        %v1739 = vpop.f32.mrf.mxu0
        %v1740 = vadd.f32 %v1726, %v1739
        %1741 = vdwg.mxu0
        %1742 = vmatpush.bf16.msra.mxu0 %v1177
        %1743 = vmatpush.bf16.msra.mxu0 %v1174
        %1744 = vmatpush.bf16.msra.mxu0 %v1171
        %1745 = vmatpush.bf16.msra.mxu0 %v1168
        %1746 = vmatpush.bf16.msra.mxu0 %v1165
        %1747 = vmatpush.bf16.msra.mxu0 %v1162
        %1748 = vmatpush.bf16.msra.mxu0 %v1159
        %1749 = vmatpush.bf16.msra.mxu0 %v1156
        %1750 = vmatmul.bf16.gmra.mxu0 %v452
        %v1751 = vpop.f32.mrf.mxu0
        %v1752 = vadd.f32 %v1738, %v1751
        %v1753 = vpop.f32.mrf.mxu0
        %v1754 = vadd.f32 %v1740, %v1753
        %1755 = vdwg.mxu0
        %1756 = vmatpush.bf16.msra.mxu0 %v1201
        %1757 = vmatpush.bf16.msra.mxu0 %v1198
        %1758 = vmatpush.bf16.msra.mxu0 %v1195
        %1759 = vmatpush.bf16.msra.mxu0 %v1192
        %1760 = vmatpush.bf16.msra.mxu0 %v1189
        %1761 = vmatpush.bf16.msra.mxu0 %v1186
        %1762 = vmatpush.bf16.msra.mxu0 %v1183
        %1763 = vmatpush.bf16.msra.mxu0 %v1180
        %1764 = vmatmul.bf16.gmra.mxu0 %v453
        %v1765 = vpop.f32.mrf.mxu0
        %v1766 = vadd.f32 %v1752, %v1765
        %v1767 = vpop.f32.mrf.mxu0
        %v1768 = vadd.f32 %v1754, %v1767
        %1769 = vdwg.mxu0
        %1770 = vmatpush.bf16.msra.mxu0 %v1225
        %1771 = vmatpush.bf16.msra.mxu0 %v1222
        %1772 = vmatpush.bf16.msra.mxu0 %v1219
        %1773 = vmatpush.bf16.msra.mxu0 %v1216
        %1774 = vmatpush.bf16.msra.mxu0 %v1213
        %1775 = vmatpush.bf16.msra.mxu0 %v1210
        %1776 = vmatpush.bf16.msra.mxu0 %v1207
        %1777 = vmatpush.bf16.msra.mxu0 %v1204
        %1778 = vmatmul.bf16.gmra.mxu0 %v454
        %v1779 = vpop.f32.mrf.mxu0
        %v1780 = vadd.f32 %v1766, %v1779
        %v1781 = vpop.f32.mrf.mxu0
        %v1782 = vadd.f32 %v1768, %v1781
        %1783 = vdwg.mxu0
        %1784 = vmatpush.bf16.msra.mxu0 %v1249
        %1785 = vmatpush.bf16.msra.mxu0 %v1246
        %1786 = vmatpush.bf16.msra.mxu0 %v1243
        %1787 = vmatpush.bf16.msra.mxu0 %v1240
        %1788 = vmatpush.bf16.msra.mxu0 %v1237
        %1789 = vmatpush.bf16.msra.mxu0 %v1234
        %1790 = vmatpush.bf16.msra.mxu0 %v1231
        %1791 = vmatpush.bf16.msra.mxu0 %v1228
        %1792 = vmatmul.bf16.gmra.mxu0 %v455
        %v1793 = vpop.f32.mrf.mxu0
        %v1794 = vadd.f32 %v1780, %v1793
        %v1795 = vpop.f32.mrf.mxu0
        %v1796 = vadd.f32 %v1782, %v1795
        %1797 = vdwg.mxu0
        %1798 = vmatpush.bf16.msra.mxu0 %v1273
        %1799 = vmatpush.bf16.msra.mxu0 %v1270
        %1800 = vmatpush.bf16.msra.mxu0 %v1267
        %1801 = vmatpush.bf16.msra.mxu0 %v1264
        %1802 = vmatpush.bf16.msra.mxu0 %v1261
        %1803 = vmatpush.bf16.msra.mxu0 %v1258
        %1804 = vmatpush.bf16.msra.mxu0 %v1255
        %1805 = vmatpush.bf16.msra.mxu0 %v1252
        %1806 = vmatmul.bf16.gmra.mxu0 %v456
        %v1807 = vpop.f32.mrf.mxu0
        %v1808 = vadd.f32 %v1794, %v1807
        %v1809 = vpop.f32.mrf.mxu0
        %v1810 = vadd.f32 %v1796, %v1809
        %1811 = vdwg.mxu0
        %1812 = vmatpush.bf16.msra.mxu0 %v1297
        %1813 = vmatpush.bf16.msra.mxu0 %v1294
        %1814 = vmatpush.bf16.msra.mxu0 %v1291
        %1815 = vmatpush.bf16.msra.mxu0 %v1288
        %1816 = vmatpush.bf16.msra.mxu0 %v1285
        %1817 = vmatpush.bf16.msra.mxu0 %v1282
        %1818 = vmatpush.bf16.msra.mxu0 %v1279
        %1819 = vmatpush.bf16.msra.mxu0 %v1276
        %1820 = vmatmul.bf16.gmra.mxu0 %v457
        %v1821 = vpop.f32.mrf.mxu0
        %v1822 = vadd.f32 %v1808, %v1821
        %v1823 = vpop.f32.mrf.mxu0
        %v1824 = vadd.f32 %v1810, %v1823
        %1825 = vdwg.mxu0
        %v1826 = vsub.f32 0.0, %v1598
        %v1827 = vsub.f32 0.0, %v1710
        %v1828 = vsub.f32 0.0, %v1822
        %v1829 = vsub.f32 0.0, %v1600
        %v1830 = vsub.f32 0.0, %v1712
        %v1831 = vsub.f32 0.0, %v1824
        %v1832 = vmul.f32 %v1826, 1.442695
        %v1833 = vpow.pop %v1832
        %v1834 = vmul.f32 %v1827, 1.442695
        %v1835 = vpow.pop %v1834
        %v1836 = vmul.f32 %v1828, 1.442695
        %v1837 = vpow.pop %v1836
        %v1838 = vmul.f32 %v1829, 1.442695
        %v1839 = vpow.pop %v1838
        %v1840 = vmul.f32 %v1830, 1.442695
        %v1841 = vpow.pop %v1840
        %v1842 = vmul.f32 %v1831, 1.442695
        %v1843 = vpow.pop %v1842
        %v1844 = vadd.f32 %v1833, 1.0
        %v1845 = vadd.f32 %v1835, 1.0
        %v1846 = vadd.f32 %v1837, 1.0
        %v1847 = vadd.f32 %v1839, 1.0
        %v1848 = vadd.f32 %v1841, 1.0
        %v1849 = vadd.f32 %v1843, 1.0
        %v1850 = vrcp.pop %v1844
        %v1851 = vrcp.pop %v1845
        %v1852 = vrcp.pop %v1846
        %v1853 = vrcp.pop %v1847
        %v1854 = vrcp.pop %v1848
        %v1855 = vrcp.pop %v1849
        %1856 = vst [vmem:[%s159] sm:$0xff] %v1850
        %1857 = vst [vmem:[%s159 + $0x8] sm:$0xff] %v1851
        %1858 = vst [vmem:[%s159 + $0x10] sm:$0xff] %v1852
        %1859 = vst [vmem:[%s159 + $0x18] sm:$0xff] %v1853
        %1860 = vst [vmem:[%s159 + $0x20] sm:$0xff] %v1854
        %1861 = vst [vmem:[%s159 + $0x28] sm:$0xff] %v1855
        %s1862 = sand.u32 %s71, 1
        %s1863 = sand.u32 %s71, 1
        %s1864 = smul.addr %s1863, 48
        %s1865 = scalar_lea.vmem [#allocation4], %s1864
        // Predicated region
        $region33: #{_lambda_.1} parent=27 // pred_check
          %p1866 = pneg %p81
        $region34: #{_lambda_.1} parent=27 // pred_check_branch
          %1868 = sbr.rel (%p1866) target = $region36
        $region35: #{_lambda_.1} parent=27 // pred_region
          %s1869 = smul.u32 3, %s16
          %s1870 = smul.addr %s1869, 8
          %s1871 = scalar_lea.vmem %s2, %s1870
          // Predicated region
          $region37: #{_lambda_.1} parent=35 // pred_check
            _
          $region38: #{_lambda_.1} parent=35 // pred_check_branch
            %1873 = sbr.rel (0) target = $region40
          $region39: #{_lambda_.1} parent=35 // pred_region
            // Predicated region
            $region41: #{_lambda_.1} parent=39 // pred_check
              _
            $region42: #{_lambda_.1} parent=39 // pred_check_branch
              %1875 = sbr.rel (0) target = $region44
            $region43: #{_lambda_.1} parent=39 // pred_region
              loop: start=0, step=1, limit=1
              $region45: #{_lambda_.1} parent=43 // loop_pre_header
                _
              $region46: #{_lambda_.1} parent=43 // loop_header
                %s1877 = sphi 0, %s1881
                %p1878 = scmp.ge.s32.totalorder %s1877, 1
                %s1882 = sphi %s1865, %s1865
                %s1883 = sphi %s1871, %s1871
              $region47: #{_lambda_.1} parent=43 // loop_header_branch
                %1880 = sbr.rel (%p1878) target = $region51
              $region48: #{_lambda_.1} parent=43 // loop_body
                %v1884 = vld [vmem:[%s1882] sm:$0xff]
                %1885 = vst [vmem:[%s1883] sm:$0xff] %v1884
                %v1886 = vld [vmem:[%s1882 + $0x8] sm:$0xff]
                %1887 = vst [vmem:[%s1883 + $0x8] sm:$0xff] %v1886
                %v1888 = vld [vmem:[%s1882 + $0x10] sm:$0xff]
                %1889 = vst [vmem:[%s1883 + $0x10] sm:$0xff] %v1888
                %v1890 = vld [vmem:[%s1882 + $0x18] sm:$0xff]
                %1891 = vst [vmem:[%s1883 + $0x30] sm:$0xff] %v1890
                %v1892 = vld [vmem:[%s1882 + $0x20] sm:$0xff]
                %1893 = vst [vmem:[%s1883 + $0x38] sm:$0xff] %v1892
                %v1894 = vld [vmem:[%s1882 + $0x28] sm:$0xff]
                %1895 = vst [vmem:[%s1883 + $0x40] sm:$0xff] %v1894
              $region49: #{_lambda_.1} parent=43 // loop_footer
                %s1881 = sadd.s32 1, %s1877
              $region50: #{_lambda_.1} parent=43 // loop_footer_branch
                %1876 = sbr.rel target = $region46
              $region51: #{_lambda_.1} parent=43 // loop_exit
                _
            $region44: #{_lambda_.1} parent=39 // pred_fallthru
              _
            // Predicated region
            $region52: #{_lambda_.1} parent=39 // pred_check
              _
            $region53: #{_lambda_.1} parent=39 // pred_check_branch
              %1897 = sbr.rel target = $region55
            $region54: #{_lambda_.1} parent=39 // pred_region
              _
            $region55: #{_lambda_.1} parent=39 // pred_fallthru
              _
          $region40: #{_lambda_.1} parent=35 // pred_fallthru
            _
          %1898 = vnop
        $region36: #{_lambda_.1} parent=27 // pred_fallthru
          _
      $region28: #{_lambda_.1} parent=5 // pred_fallthru
        _
      %p1899 = scmp.le.s32.totalorder 2, %s11
      // Predicated region
      $region56: #{_lambda_.1} parent=5 // pred_check
        %p1900 = pneg %p1899
      $region57: #{_lambda_.1} parent=5 // pred_check_branch
        %1902 = sbr.rel (%p1900) target = $region59
      $region58: #{_lambda_.1} parent=5 // pred_region
        %s1903 = ssub.s32 %s11, 2
        // Predicated region
        $region60: #{_lambda_.1} parent=58 // pred_check
          %p1904 = pneg %p87
        $region61: #{_lambda_.1} parent=58 // pred_check_branch
          %1906 = sbr.rel (%p1904) target = $region63
        $region62: #{_lambda_.1} parent=58 // pred_region
          %s1907 = sand.u32 %s72, 1
          %s1908 = sand.u32 %s72, 1
          %s1909 = smul.addr %s1908, 48
          %s1910 = scalar_lea.vmem [#allocation4], %s1909
        $region63: #{_lambda_.1} parent=58 // pred_fallthru
          _
      $region59: #{_lambda_.1} parent=5 // pred_fallthru
        _
    $region6: #{_lambda_.1} parent=1 // loop_footer
      %s15 = sadd.s32 1, %s11
    $region7: #{_lambda_.1} parent=1 // loop_footer_branch
      %10 = sbr.rel target = $region3
    $region8: #{_lambda_.1} parent=1 // loop_exit
      _
    %1911 = vsyncpa [#allocation3], 1
    %s1912 = scalar_lea.sflag [#allocation3], 1
    %1913 = vsyncpa %s1912, 1

</llo_original>
